<compile_context>
chip_gen: v7x
topology: tpu7x:2x2x1
jax: 0.10.0
libtpu: 0.0.40
codegen_flags: <defaults>
</compile_context>

<pallas_src>
import functools

import jax
import jax.numpy as jnp
from jax.experimental import pallas as pl
from jax.experimental.pallas import tpu as pltpu

_MIB = 1024 * 1024


# ---------------------------------------------------------------------------
# Kernels
# ---------------------------------------------------------------------------

def sdpa_kernel(q_ref, k_ref, v_ref, mask_ref, ctx_ref, att_ref, *,
                scale, att_is_bf16):
    """Full-softmax SDPA over one (bb, th, tq) block; K/V hold all of L.

    Block shapes:
      q_ref   : (Bb, TH, TQ, DK)      mask_ref: (Bb, 1, L)
      k_ref   : (Bb, TH, L,  DK)      ctx_ref : (Bb, TH, TQ, DK)
      v_ref   : (Bb, TH, L,  DK)      att_ref : (Bb, TH, TQ, L)
    """
    Bb, TH, TQ, DK = q_ref.shape
    L = k_ref.shape[2]
    BH = Bb * TH

    # Scale folded into the smallest operand right at the load; MXU operands
    # are bf16 with f32 accumulation.
    inv_scale = 1.0 / scale
    qb = (q_ref[...] * inv_scale).astype(jnp.bfloat16).reshape(BH, TQ, DK)
    kb = k_ref[...].astype(jnp.bfloat16).reshape(BH, L, DK)
    s = jnp.einsum('bqd,bkd->bqk', qb, kb,
                   preferred_element_type=jnp.float32).reshape(Bb, TH, TQ, L)

    # Additive key-padding mask, built once per block.  Matches
    # masked_fill(mask == 0, -1e9) for 0/1 masks (exp underflows to 0).
    madd = (mask_ref[...] - 1.0) * 1.0e9                   # (Bb, 1, L)
    s = s + madd[:, :, None, :]                            # (Bb, TH, TQ, L)

    # Numerically stable softmax, all in f32 (v5e-safe: no bf16 VPU work).
    s_max = jnp.max(s, axis=-1, keepdims=True)
    e = jnp.exp(s - s_max)
    denom = jnp.sum(e, axis=-1, keepdims=True)
    att = e * pl.reciprocal(denom, approx=True)            # (Bb, TH, TQ, L) f32

    # Single f32->bf16 cast of the largest tensor, reused for both the MXU
    # operand and (when att_dtype is bf16) the att store.
    att_b = att.astype(jnp.bfloat16)
    vb = v_ref[...].astype(jnp.bfloat16).reshape(BH, L, DK)
    ctx = jnp.einsum('bqk,bkd->bqd', att_b.reshape(BH, TQ, L), vb,
                     preferred_element_type=jnp.float32)

    ctx_ref[...] = ctx.reshape(Bb, TH, TQ, DK).astype(ctx_ref.dtype)
    if att_is_bf16:
        att_ref[...] = att_b
    else:
        att_ref[...] = att.astype(att_ref.dtype)


def flash_sdpa_kernel(q_ref, k_ref, v_ref, mask_ref, ctx_ref,
                      m_sc, l_sc, acc_sc, *, scale):
    """Online-softmax SDPA (ctx only, no O(L^2) att writeback).

    Grid axis 3 tiles the keys ("arbitrary"); scratch carries running
    max / denom / accumulator across key tiles.
    """
    ki = pl.program_id(3)

    @pl.when(ki == 0)
    def _():
        m_sc[...] = jnp.full(m_sc.shape, -jnp.inf, m_sc.dtype)
        l_sc[...] = jnp.zeros(l_sc.shape, l_sc.dtype)
        acc_sc[...] = jnp.zeros(acc_sc.shape, acc_sc.dtype)

    Bb, TH, TQ, DK = q_ref.shape
    TK = k_ref.shape[2]
    BH = Bb * TH

    inv_scale = 1.0 / scale
    qb = (q_ref[...] * inv_scale).astype(jnp.bfloat16).reshape(BH, TQ, DK)
    kb = k_ref[...].astype(jnp.bfloat16).reshape(BH, TK, DK)
    s = jnp.einsum('bqd,bkd->bqk', qb, kb,
                   preferred_element_type=jnp.float32).reshape(Bb, TH, TQ, TK)
    madd = (mask_ref[...] - 1.0) * 1.0e9                   # (Bb, 1, TK)
    s = s + madd[:, :, None, :]

    m_prev = m_sc[...]
    m_new = jnp.maximum(m_prev, jnp.max(s, axis=-1, keepdims=True))
    alpha = jnp.exp(m_prev - m_new)
    p = jnp.exp(s - m_new)
    l_sc[...] = alpha * l_sc[...] + jnp.sum(p, axis=-1, keepdims=True)
    pv = jnp.einsum('bqk,bkd->bqd',
                    p.reshape(BH, TQ, TK).astype(jnp.bfloat16),
                    v_ref[...].astype(jnp.bfloat16).reshape(BH, TK, DK),
                    preferred_element_type=jnp.float32).reshape(Bb, TH, TQ, DK)
    acc_sc[...] = alpha * acc_sc[...] + pv
    m_sc[...] = m_new

    @pl.when(ki == pl.num_programs(3) - 1)
    def _():
        ctx_ref[...] = (acc_sc[...] *
                        pl.reciprocal(l_sc[...], approx=True)).astype(ctx_ref.dtype)


# ---------------------------------------------------------------------------
# Chip-aware tiling helpers
# ---------------------------------------------------------------------------

def _divisors_desc(n):
    return [d for d in range(n, 0, -1) if n % d == 0]


def _vmem_info():
    cap = None
    try:
        cap = int(pltpu.get_tpu_info().vmem_capacity_bytes)
    except Exception:
        cap = None
    if not cap or cap <= 0:
        cap = 64 * _MIB                    # conservative fallback (v7x per-TC)
    kind = ""
    try:
        kind = str(jax.devices()[0].device_kind).lower()
    except Exception:
        pass
    return cap, kind


def _greedy_shrink(cand_lists, nbytes_fn, budget):
    """Shrink earlier candidate lists first until nbytes_fn(...) <= budget."""
    idx = [0] * len(cand_lists)

    def cur():
        return nbytes_fn(*(c[i] for c, i in zip(cand_lists, idx)))

    while cur() > budget:
        for j in range(len(cand_lists)):
            if idx[j] + 1 < len(cand_lists[j]):
                idx[j] += 1
                break
        else:
            break
    return tuple(c[i] for c, i in zip(cand_lists, idx))


def _ensure_two_grid_steps(bb, th, tq, B, H, L):
    """Guarantee >=2 steps on the parallel axes so both v7x cores get work."""
    if (B // bb) * (H // th) * (L // tq) >= 2:
        return bb, th, tq
    for d in _divisors_desc(H):
        if d < th:
            return bb, d, tq
    for d in _divisors_desc(B):
        if d < bb:
            return d, th, tq
    for d in _divisors_desc(L):
        if d < tq and d % 8 == 0:
            return bb, th, d
    return bb, th, tq


def _kv_block_spec(shape, index_map, buffer_count):
    """K/V blocks are qi-invariant; single-buffer them when VMEM is tight."""
    if buffer_count != 2 and hasattr(pl, "Buffered"):
        try:
            return pl.BlockSpec(shape, index_map,
                                pipeline_mode=pl.Buffered(buffer_count))
        except Exception:
            pass
    return pl.BlockSpec(shape, index_map)


def _vmem_limit(need_bytes, cap):
    return int(min(max(int(need_bytes * 1.25) + 4 * _MIB, 32 * _MIB),
                   int(cap * 0.9)))


# ---------------------------------------------------------------------------
# Wrappers
# ---------------------------------------------------------------------------

def _sdpa_full(Q, K, V, mask3d, scale, att_dtype,
               bb_list, th_list, tq_list, auto_tiles,
               kv_buffer_count, budget, cap):
    B, H, L, DK = Q.shape
    att_isz = jnp.dtype(att_dtype).itemsize

    def nbytes(bb, th, tq):
        q = bb * th * tq * DK * 4
        kv = bb * th * L * DK * 4
        mk = bb * L * 4
        cx = bb * th * tq * DK * 4
        at = bb * th * tq * L * att_isz
        tmp = bb * th * tq * L * 4 * 2          # f32 scores / exp temporaries
        return (2 * q + kv_buffer_count * 2 * kv + 2 * mk
                + 2 * cx + 2 * at + tmp)

    bb, th, tq = _greedy_shrink([bb_list, th_list, tq_list], nbytes, budget)
    if auto_tiles:
        bb, th, tq = _ensure_two_grid_steps(bb, th, tq, B, H, L)

    grid = (B // bb, H // th, L // tq)           # qi innermost: K/V reused
    in_specs = [
        pl.BlockSpec((bb, th, tq, DK), lambda bi, hi, qi: (bi, hi, qi, 0)),
        _kv_block_spec((bb, th, L, DK), lambda bi, hi, qi: (bi, hi, 0, 0),
                       kv_buffer_count),
        _kv_block_spec((bb, th, L, DK), lambda bi, hi, qi: (bi, hi, 0, 0),
                       kv_buffer_count),
        pl.BlockSpec((bb, 1, L), lambda bi, hi, qi: (bi, 0, 0)),
    ]
    out_shapes = (
        jax.ShapeDtypeStruct((B, H, L, DK), Q.dtype),
        jax.ShapeDtypeStruct((B, H, L, L), att_dtype),
    )
    out_specs = (
        pl.BlockSpec((bb, th, tq, DK), lambda bi, hi, qi: (bi, hi, qi, 0)),
        pl.BlockSpec((bb, th, tq, L), lambda bi, hi, qi: (bi, hi, qi, 0)),
    )

    # Per-call (not per-step) totals for the XLA scheduler.
    flops = 4 * B * H * L * L * DK
    bytes_accessed = (3 * B * H * L * DK + B * L + B * H * L * DK) * 4 \
                     + B * H * L * L * att_isz
    cost = pl.CostEstimate(flops=flops, transcendentals=B * H * L * L,
                           bytes_accessed=bytes_accessed)

    att_is_bf16 = jnp.dtype(att_dtype) == jnp.dtype(jnp.bfloat16)
    fn = pl.pallas_call(
        functools.partial(sdpa_kernel, scale=scale, att_is_bf16=att_is_bf16),
        out_shape=out_shapes,
        grid_spec=pltpu.PrefetchScalarGridSpec(
            num_scalar_prefetch=0,
            grid=grid,
            in_specs=in_specs,
            out_specs=out_specs,
        ),
        compiler_params=pltpu.CompilerParams(
            dimension_semantics=("parallel", "parallel", "parallel"),
            vmem_limit_bytes=_vmem_limit(nbytes(bb, th, tq), cap),
        ),
        cost_estimate=cost,
    )
    return fn(Q, K, V, mask3d)


def _sdpa_flash(Q, K, V, mask3d, scale,
                bb_list, th_list, tq_list, tk, auto_tiles, budget, cap):
    B, H, L, DK = Q.shape

    # Key tile must keep the mask block lane-dense: multiple of 128, or L.
    tk_list = [d for d in _divisors_desc(L) if d % 128 == 0 and d <= 512] or [L]
    if tk is not None:
        assert L % tk == 0 and (tk % 128 == 0 or tk == L), \
            "tk must divide L and be a multiple of 128 (or equal L)"
        tk_list = [tk]

    def nbytes(bb, th, tk_, tq):
        q = bb * th * tq * DK * 4
        kv = bb * th * tk_ * DK * 4
        mk = bb * tk_ * 4
        cx = bb * th * tq * DK * 4
        sc = bb * th * tq * (DK + 2) * 4          # m / l / acc scratch
        tmp = bb * th * tq * tk_ * 4 * 3          # s / p / rescale temporaries
        return 2 * q + 4 * kv + 2 * mk + 2 * cx + sc + tmp

    bb, th, tk_, tq = _greedy_shrink([bb_list, th_list, tk_list, tq_list],
                                     nbytes, budget)
    if auto_tiles:
        bb, th, tq = _ensure_two_grid_steps(bb, th, tq, B, H, L)

    grid = (B // bb, H // th, L // tq, L // tk_)
    in_specs = [
        pl.BlockSpec((bb, th, tq, DK), lambda bi, hi, qi, ki: (bi, hi, qi, 0)),
        pl.BlockSpec((bb, th, tk_, DK), lambda bi, hi, qi, ki: (bi, hi, ki, 0)),
        pl.BlockSpec((bb, th, tk_, DK), lambda bi, hi, qi, ki: (bi, hi, ki, 0)),
        pl.BlockSpec((bb, 1, tk_), lambda bi, hi, qi, ki: (bi, 0, ki)),
    ]
    out_spec = pl.BlockSpec((bb, th, tq, DK),
                            lambda bi, hi, qi, ki: (bi, hi, qi, 0))

    flops = 4 * B * H * L * L * DK
    bytes_accessed = (3 * B * H * L * DK + B * L + B * H * L * DK) * 4
    cost = pl.CostEstimate(flops=flops, transcendentals=B * H * L * L,
                           bytes_accessed=bytes_accessed)

    fn = pl.pallas_call(
        functools.partial(flash_sdpa_kernel, scale=scale),
        out_shape=jax.ShapeDtypeStruct((B, H, L, DK), Q.dtype),
        grid_spec=pltpu.PrefetchScalarGridSpec(
            num_scalar_prefetch=0,
            grid=grid,
            in_specs=in_specs,
            out_specs=out_spec,
            scratch_shapes=[
                pltpu.VMEM((bb, th, tq, 1), jnp.float32),   # running max
                pltpu.VMEM((bb, th, tq, 1), jnp.float32),   # running denom
                pltpu.VMEM((bb, th, tq, DK), jnp.float32),  # running acc
            ],
        ),
        compiler_params=pltpu.CompilerParams(
            dimension_semantics=("parallel", "parallel", "parallel",
                                 "arbitrary"),
            vmem_limit_bytes=_vmem_limit(nbytes(bb, th, tk_, tq), cap),
        ),
        cost_estimate=cost,
    )
    return fn(Q, K, V, mask3d)


def scaled_dot_product_attention(Q, K, V, mask=None, *, scale=None,
                                 return_att=True, att_dtype=jnp.float32,
                                 bb=None, th=None, tq=None, tk=None,
                                 kv_buffer_count=None):
    """Pallas TPU scaled-dot-product attention.

    Q/K/V: (B, H, L, DK) f32.  mask: (B, 1, 1, L) or (B, L), 0.0 at padded
    keys, or None.  Returns (context, att) unless return_att=False, in which
    case only context is returned via an online-softmax kernel with no
    O(L^2) attention-matrix writeback.
    """
    B, H, L, DK = Q.shape
    if scale is None:
        scale = float(DK) ** 0.5

    if mask is None:
        mask3d = jnp.ones((B, 1, L), jnp.float32)
    else:
        mask3d = mask.reshape(B, 1, L).astype(jnp.float32)

    cap, kind = _vmem_info()
    small_vmem = cap < 96 * _MIB                   # v7x-class (64 MiB / TC)
    budget = int(cap * 0.55)                       # tile-selection byte budget
    # v5e / v7x: 128-row query tiles; v6e (128 MiB VMEM, 256-wide MXU): 256.
    tq_cap = 128 if (small_vmem or "v5" in kind) else 256
    if kv_buffer_count is None:
        kv_buffer_count = 1 if small_vmem else 2

    # Divisor-only candidates (fixes degenerate bb=B / tq=L fallbacks).
    bb_list = [d for d in _divisors_desc(B) if d <= 8] or [1]
    th_list = _divisors_desc(H)
    tq_list = [d for d in _divisors_desc(L)
               if (d % 8 == 0 or d == L) and d <= tq_cap]
    if not tq_list:
        tq_list = [d for d in _divisors_desc(L) if d % 8 == 0 or d == L]

    if bb is not None:
        assert B % bb == 0, "bb must divide B"
        bb_list = [bb]
    if th is not None:
        assert H % th == 0, "th must divide H"
        th_list = [th]
    if tq is not None:
        assert L % tq == 0 and (tq % 8 == 0 or tq == L), \
            "tq must divide L and be a multiple of 8 (or equal L)"
        tq_list = [tq]
    auto_tiles = bb is None and th is None and tq is None

    if return_att:
        return _sdpa_full(Q, K, V, mask3d, scale, att_dtype,
                          bb_list, th_list, tq_list, auto_tiles,
                          kv_buffer_count, budget, cap)
    return _sdpa_flash(Q, K, V, mask3d, scale,
                       bb_list, th_list, tq_list, tk, auto_tiles,
                       budget, cap)


# ---------------------------------------------------------------------------
# Reference + self-test
# ---------------------------------------------------------------------------

def reference_sdpa(Q, K, V, mask, scale):
    """Pure-JAX reference matching the PyTorch module (eval mode, f32)."""
    att = jnp.einsum('bhqd,bhkd->bhqk', Q / scale, K)
    if mask is not None:
        att = jnp.where(mask == 0.0, -1.0e9, att)      # mask (B, 1, 1, L)
    att = jax.nn.softmax(att, axis=-1)
    ctx = jnp.einsum('bhqk,bhkd->bhqd', att, V)
    return ctx, att


if __name__ == "__main__":
    B, H, L, DK = 2, 4, 16, 8
    scale = float(DK) ** 0.5

    key = jax.random.PRNGKey(0)
    kq, kk, kv = jax.random.split(key, 3)
    Q = jax.random.normal(kq, (B, H, L, DK), jnp.float32)
    K = jax.random.normal(kk, (B, H, L, DK), jnp.float32)
    V = jax.random.normal(kv, (B, H, L, DK), jnp.float32)
    # Padding mask: last three key positions of the second sequence padded.
    mask = jnp.ones((B, 1, 1, L), jnp.float32).at[1, :, :, -3:].set(0.0)

    ctx_ref, att_ref = reference_sdpa(Q, K, V, mask, scale)

    # Full path: returns (context, att) like the PyTorch module (att in f32).
    ctx, att = scaled_dot_product_attention(Q, K, V, mask, scale=scale)
    ctx = jax.block_until_ready(ctx)
    att = jax.block_until_ready(att)
    assert ctx.shape == (B, H, L, DK) and att.shape == (B, H, L, L)
    assert att.dtype == jnp.float32
    # Tolerance covers bf16 MXU operands (f32 accumulation) + approx recip.
    assert jnp.allclose(ctx, ctx_ref, atol=5e-2, rtol=5e-2)
    assert jnp.allclose(att, att_ref, atol=5e-2, rtol=5e-2)

    # ctx-only path: online-softmax (flash) kernel, no O(L^2) att writeback.
    ctx2 = scaled_dot_product_attention(Q, K, V, mask, scale=scale,
                                        return_att=False)
    ctx2 = jax.block_until_ready(ctx2)
    assert ctx2.shape == (B, H, L, DK)
    assert jnp.allclose(ctx2, ctx_ref, atol=5e-2, rtol=5e-2)

    print("KERNEL_OK")
</pallas_src>

<mosaic_0001>
module attributes {stable_mosaic.version = 11 : i64} {
  func.func @sdpa_kernel(%arg0: i32, %arg1: i32, %arg2: i32, %arg3: memref<2x2x16x8xf32, #tpu.memory_space<vmem>>, %arg4: memref<2x2x16x8xf32, #tpu.memory_space<vmem>>, %arg5: memref<2x2x16x8xf32, #tpu.memory_space<vmem>>, %arg6: memref<2x1x16xf32, #tpu.memory_space<vmem>>, %arg7: memref<2x2x16x8xf32, #tpu.memory_space<vmem>>, %arg8: memref<2x2x16x16xf32, #tpu.memory_space<vmem>>) attributes {dimension_semantics = [#tpu.dimension_semantics<parallel>, #tpu.dimension_semantics<parallel>, #tpu.dimension_semantics<parallel>], iteration_bounds = array<i64: 1, 2, 1>, scalar_prefetch = 0 : i64, scratch_operands = 0 : i64, tpu.core_type = #tpu.core_type<tc>, window_params = [{transform_indices = @transform_0, window_bounds = array<i64: 2, 2, 16, 8>}, {pipeline_mode = #tpu.pipeline_mode<synchronous>, transform_indices = @transform_1, window_bounds = array<i64: 2, 2, 16, 8>}, {pipeline_mode = #tpu.pipeline_mode<synchronous>, transform_indices = @transform_2, window_bounds = array<i64: 2, 2, 16, 8>}, {transform_indices = @transform_3, window_bounds = array<i64: 2, 1, 16>}, {transform_indices = @transform_4, window_bounds = array<i64: 2, 2, 16, 8>}, {transform_indices = @transform_5, window_bounds = array<i64: 2, 2, 16, 16>}]} {
    %c0 = arith.constant 0 : index
    %c0_0 = arith.constant 0 : index
    %c0_1 = arith.constant 0 : index
    %c0_2 = arith.constant 0 : index
    %0 = vector.load %arg3[%c0, %c0_0, %c0_1, %c0_2] : memref<2x2x16x8xf32, #tpu.memory_space<vmem>>, vector<2x2x16x8xf32>
    %cst = arith.constant 0.353553385 : f32
    %1 = vector.broadcast %cst : f32 to vector<2x2x16x8xf32>
    %2 = arith.mulf %0, %1 : vector<2x2x16x8xf32>
    %3 = arith.truncf %2 : vector<2x2x16x8xf32> to vector<2x2x16x8xbf16>
    %4 = vector.shape_cast %3 : vector<2x2x16x8xbf16> to vector<4x16x8xbf16>
    %c0_3 = arith.constant 0 : index
    %c0_4 = arith.constant 0 : index
    %c0_5 = arith.constant 0 : index
    %c0_6 = arith.constant 0 : index
    %5 = vector.load %arg4[%c0_3, %c0_4, %c0_5, %c0_6] : memref<2x2x16x8xf32, #tpu.memory_space<vmem>>, vector<2x2x16x8xf32>
    %6 = arith.truncf %5 : vector<2x2x16x8xf32> to vector<2x2x16x8xbf16>
    %7 = vector.shape_cast %6 : vector<2x2x16x8xbf16> to vector<4x16x8xbf16>
    "tpu.trace_start"() <{level = 10 : i32, message = "bqd,bkd->bqk"}> : () -> ()
    %cst_7 = arith.constant dense<0.000000e+00> : vector<4x16x16xf32>
    %8 = tpu.matmul %4, %7, %cst_7 {dimension_numbers = #tpu.dot_dimension_numbers<[2], [2], [1], [1], [0, 0, 0, 1, 1, 1], [0], [0]>} : vector<4x16x8xbf16>, vector<4x16x8xbf16>, vector<4x16x16xf32> -> vector<4x16x16xf32>
    "tpu.trace_stop"() : () -> ()
    %9 = vector.shape_cast %8 : vector<4x16x16xf32> to vector<2x2x16x16xf32>
    %c0_8 = arith.constant 0 : index
    %c0_9 = arith.constant 0 : index
    %c0_10 = arith.constant 0 : index
    %10 = vector.load %arg6[%c0_8, %c0_9, %c0_10] : memref<2x1x16xf32, #tpu.memory_space<vmem>>, vector<2x1x16xf32>
    %cst_11 = arith.constant 1.000000e+00 : f32
    %11 = vector.broadcast %cst_11 : f32 to vector<2x1x16xf32>
    %12 = arith.subf %10, %11 : vector<2x1x16xf32>
    %cst_12 = arith.constant 1.000000e+09 : f32
    %13 = vector.broadcast %cst_12 : f32 to vector<2x1x16xf32>
    %14 = arith.mulf %12, %13 : vector<2x1x16xf32>
    %15 = vector.shape_cast %14 : vector<2x1x16xf32> to vector<2x1x1x16xf32>
    %16 = vector.broadcast %15 : vector<2x1x1x16xf32> to vector<2x2x16x16xf32>
    %17 = arith.addf %9, %16 : vector<2x2x16x16xf32>
    %cst_13 = arith.constant dense<0xFF800000> : vector<2x2x16xf32>
    %18 = vector.multi_reduction <maximumf>, %17, %cst_13 [3] : vector<2x2x16x16xf32> to vector<2x2x16xf32>
    %19 = vector.shape_cast %18 : vector<2x2x16xf32> to vector<2x2x16x1xf32>
    %20 = vector.broadcast %19 : vector<2x2x16x1xf32> to vector<2x2x16x16xf32>
    %21 = arith.subf %17, %20 : vector<2x2x16x16xf32>
    %22 = math.exp %21 : vector<2x2x16x16xf32>
    %cst_14 = arith.constant dense<0.000000e+00> : vector<2x2x16xf32>
    %23 = vector.multi_reduction <add>, %22, %cst_14 [3] : vector<2x2x16x16xf32> to vector<2x2x16xf32>
    %24 = vector.shape_cast %23 : vector<2x2x16xf32> to vector<2x2x16x1xf32>
    %25 = tpu.reciprocal %24 {approx = true} : vector<2x2x16x1xf32> -> vector<2x2x16x1xf32>
    %26 = vector.broadcast %25 : vector<2x2x16x1xf32> to vector<2x2x16x16xf32>
    %27 = arith.mulf %22, %26 : vector<2x2x16x16xf32>
    %28 = arith.truncf %27 : vector<2x2x16x16xf32> to vector<2x2x16x16xbf16>
    %c0_15 = arith.constant 0 : index
    %c0_16 = arith.constant 0 : index
    %c0_17 = arith.constant 0 : index
    %c0_18 = arith.constant 0 : index
    %29 = vector.load %arg5[%c0_15, %c0_16, %c0_17, %c0_18] : memref<2x2x16x8xf32, #tpu.memory_space<vmem>>, vector<2x2x16x8xf32>
    %30 = arith.truncf %29 : vector<2x2x16x8xf32> to vector<2x2x16x8xbf16>
    %31 = vector.shape_cast %30 : vector<2x2x16x8xbf16> to vector<4x16x8xbf16>
    %32 = vector.shape_cast %28 : vector<2x2x16x16xbf16> to vector<4x16x16xbf16>
    "tpu.trace_start"() <{level = 10 : i32, message = "bqk,bkd->bqd"}> : () -> ()
    %cst_19 = arith.constant dense<0.000000e+00> : vector<4x16x8xf32>
    %33 = tpu.matmul %32, %31, %cst_19 {dimension_numbers = #tpu.dot_dimension_numbers<[2], [1], [1], [2], [0, 0, 0, 1, 1, 2], [0], [0]>} : vector<4x16x16xbf16>, vector<4x16x8xbf16>, vector<4x16x8xf32> -> vector<4x16x8xf32>
    "tpu.trace_stop"() : () -> ()
    %34 = vector.shape_cast %33 : vector<4x16x8xf32> to vector<2x2x16x8xf32>
    %c0_20 = arith.constant 0 : index
    %c0_21 = arith.constant 0 : index
    %c0_22 = arith.constant 0 : index
    %c0_23 = arith.constant 0 : index
    %35 = vector.load %arg7[%c0_20, %c0_21, %c0_22, %c0_23] : memref<2x2x16x8xf32, #tpu.memory_space<vmem>>, vector<2x2x16x8xf32>
    tpu.vector_store %arg7[%c0_20, %c0_21, %c0_22, %c0_23], %34 {strides = array<i32>} : memref<2x2x16x8xf32, #tpu.memory_space<vmem>>, vector<2x2x16x8xf32>,
    %c0_24 = arith.constant 0 : index
    %c0_25 = arith.constant 0 : index
    %c0_26 = arith.constant 0 : index
    %c0_27 = arith.constant 0 : index
    %36 = vector.load %arg8[%c0_24, %c0_25, %c0_26, %c0_27] : memref<2x2x16x16xf32, #tpu.memory_space<vmem>>, vector<2x2x16x16xf32>
    tpu.vector_store %arg8[%c0_24, %c0_25, %c0_26, %c0_27], %27 {strides = array<i32>} : memref<2x2x16x16xf32, #tpu.memory_space<vmem>>, vector<2x2x16x16xf32>,
    return
  }
  func.func @transform_0(%arg0: i32, %arg1: i32, %arg2: i32) -> (i32, i32, i32, i32) {
    %c0_i32 = arith.constant 0 : i32
    %c0_i32_0 = arith.constant 0 : i32
    return %arg0, %arg1, %arg2, %c0_i32 : i32, i32, i32, i32
  }
  func.func @transform_1(%arg0: i32, %arg1: i32, %arg2: i32) -> (i32, i32, i32, i32) {
    %c0_i32 = arith.constant 0 : i32
    %c0_i32_0 = arith.constant 0 : i32
    %c0_i32_1 = arith.constant 0 : i32
    return %arg0, %arg1, %c0_i32, %c0_i32_0 : i32, i32, i32, i32
  }
  func.func @transform_2(%arg0: i32, %arg1: i32, %arg2: i32) -> (i32, i32, i32, i32) {
    %c0_i32 = arith.constant 0 : i32
    %c0_i32_0 = arith.constant 0 : i32
    %c0_i32_1 = arith.constant 0 : i32
    return %arg0, %arg1, %c0_i32, %c0_i32_0 : i32, i32, i32, i32
  }
  func.func @transform_3(%arg0: i32, %arg1: i32, %arg2: i32) -> (i32, i32, i32) {
    %c0_i32 = arith.constant 0 : i32
    %c0_i32_0 = arith.constant 0 : i32
    %c0_i32_1 = arith.constant 0 : i32
    return %arg0, %c0_i32, %c0_i32_0 : i32, i32, i32
  }
  func.func @transform_4(%arg0: i32, %arg1: i32, %arg2: i32) -> (i32, i32, i32, i32) {
    %c0_i32 = arith.constant 0 : i32
    %c0_i32_0 = arith.constant 0 : i32
    return %arg0, %arg1, %arg2, %c0_i32 : i32, i32, i32, i32
  }
  func.func @transform_5(%arg0: i32, %arg1: i32, %arg2: i32) -> (i32, i32, i32, i32) {
    %c0_i32 = arith.constant 0 : i32
    %c0_i32_0 = arith.constant 0 : i32
    return %arg0, %arg1, %arg2, %c0_i32 : i32, i32, i32, i32
  }
}

</mosaic_0001>

<llo_original>
// kernel: tpu_custom_call.1
$region0: #{tpu_custom_call.1}
  #allocation0 [shape = 'u32[]', space=smem, size = 0x4, offset = 0x4, fixed_abs, tag = 'smem constant byte address 0x4 - core index']
  #allocation1 [shape = 'u32[144,128]{1,0:T(1,128)}', space=vmem, size = 0x12000, scoped, tag = 'internal scratch']
  #allocation8 [shape = 's32[]', space=sflag, size = 0x4, offset = 0, fixed_abs, tag = 'sflag constant byte address 0x0 - dummy sync flag']
  %s0 = inlined_call_operand.vmem [shape: f32[2,4,16,8], index: 0, kind: input, shape index: {}]
  %s1 = inlined_call_operand.vmem [shape: f32[2,4,16,8], index: 1, kind: input, shape index: {}]
  %s2 = inlined_call_operand.vmem [shape: f32[2,4,16,8], index: 2, kind: input, shape index: {}]
  %s3 = inlined_call_operand.vmem [shape: f32[2,1,16], index: 3, kind: input, shape index: {}]
  %s4 = inlined_call_operand.vmem [shape: f32[2,4,16,8], index: 4, kind: output, shape index: {0}]
  %s5 = inlined_call_operand.hbm [shape: f32[2,4,16,16], index: 5, kind: output, shape index: {1}]
  %6 = xla_tuple %s4, %s5
  %s7 = sld [smem:[#allocation0]]
  $region205: #{tpu_custom_call.1} parent=0
    _
  %s9 = ssub.s32 1, %s7
  %s10 = scalar_select 0, %s9, %s7
  $region1: #{tpu_custom_call.1} parent=0
    #allocation2 [shape = 'u8[65536]{0}', space=vmem, size = 0x10000, scoped, tag = 'input window, operand 0']
    #allocation3 [shape = 'u8[32768]{0}', space=vmem, size = 0x8000, scoped, tag = 'input window, operand 1, single buffered']
    #allocation4 [shape = 'u8[32768]{0}', space=vmem, size = 0x8000, scoped, tag = 'input window, operand 2, single buffered']
    #allocation5 [shape = 'u8[65536]{0}', space=vmem, size = 0x10000, scoped, tag = 'output window, operand 0']
    #allocation6 [shape = 'u8[65536]{0}', space=vmem, size = 0x10000, scoped, tag = 'output window, operand 1']
    #allocation7 [shape = 's32[2]{0}', space=sflag, size = 0x8, scoped, tag = 'scoped memory for tpu_custom_call.1']
    %11 = vsyncpa [#allocation7], 0
    %s12 = scalar_lea.sflag [#allocation7], 1
    %13 = vsyncpa %s12, 0
    loop: start=0, step=1, limit=4
    $region2: #{tpu_custom_call.1} parent=1 // loop_pre_header
      _
    $region3: #{tpu_custom_call.1} parent=1 // loop_header
      %s15 = sphi 0, %s19
      %p16 = scmp.ge.s32.totalorder %s15, 4
      %s22 = sphi 0, %s41
      %s23 = sphi 0, %s37
      %s24 = sphi 0, %s33
      %s25 = sphi 0, %s22
      %s26 = sphi 0, %s23
      %s27 = sphi 0, %s24
      %s28 = sphi 0, %s25
      %s29 = sphi 0, %s26
      %s30 = sphi 0, %s27
      %s48 = sphi 0, %s50
      %s51 = sphi 0, %s48
      %s52 = sphi 0, %s51
      %s68 = sphi 0, %s52
      %s76 = sphi 0, %s78
      %s79 = sphi 0, %s76
      %s80 = sphi 0, %s79
      %s96 = sphi 0, %s80
      %s104 = sphi 0, %s106
      %s107 = sphi 0, %s104
      %s108 = sphi 0, %s107
      %s124 = sphi 0, %s108
      %s130 = sphi 0, %s132
      %s133 = sphi 0, %s130
      %s134 = sphi 0, %s133
      %s150 = sphi 0, %s134
      %s160 = sphi 0, %s162
      %s163 = sphi 0, %s160
      %s164 = sphi 0, %s163
      %s180 = sphi 0, %s164
      %s190 = sphi 0, %s192
      %s193 = sphi 0, %s190
      %s194 = sphi 0, %s193
      %s210 = sphi 0, %s194
    $region4: #{tpu_custom_call.1} parent=1 // loop_header_branch
      %18 = sbr.rel (%p16) target = $region8
    $region5: #{tpu_custom_call.1} parent=1 // loop_body
      %s20 = ssub.s32 %s15, 1
      %s21 = ssub.s32 %s15, 2
      %s31 = sadd.s32 1, %s24
      %p32 = scmp.ge.s32.totalorder %s31, 1
      %s33 = scalar_select %p32, 0, %s31
      %s34 = sadd.s32 1, %s23
      %s35 = scalar_select %p32, %s34, %s23
      %p36 = scmp.ge.s32.totalorder %s35, 2
      %s37 = scalar_select %p36, 0, %s35
      %s38 = sadd.s32 1, %s22
      %s39 = scalar_select %p36, %s38, %s22
      %p40 = scmp.ge.s32.totalorder %s39, 1
      %s41 = scalar_select %p40, 0, %s39
      %s42 = ssub.s32 %s22, %s41
      %s43 = ssub.s32 %s23, %s37
      %s44 = sor.u32 %s42, %s43
      %s45 = ssub.s32 %s24, %s33
      %s46 = sor.u32 %s44, %s45
      %p47 = scmp.eq.s32.totalorder %s46, 0
      %s49 = sadd.s32 %s48, 1
      %s50 = scalar_select %p47, %s48, %s49
      %p53 = pneg %p47
      %p54 = scmp.eq.s32.totalorder %s15, 1
      %p55 = por %p53, %p54
      %p56 = scmp.ne.s32.totalorder %s48, %s51
      %p57 = scmp.eq.s32.totalorder %s15, 0
      %p58 = por %p56, %p57
      %p59 = scmp.ne.s32.totalorder %s48, %s51
      %p60 = scmp.eq.s32.totalorder %s20, 1
      %p61 = por %p59, %p60
      %p62 = scmp.ne.s32.totalorder %s51, %s52
      %p63 = scmp.eq.s32.totalorder %s20, 0
      %p64 = por %p62, %p63
      %p65 = scmp.ne.s32.totalorder %s51, %s52
      %p66 = scmp.eq.s32.totalorder %s21, 1
      %p67 = por %p65, %p66
      %p69 = scmp.ne.s32.totalorder %s52, %s68
      %p70 = scmp.eq.s32.totalorder %s21, 0
      %p71 = por %p69, %p70
      %s72 = ssub.s32 %s22, %s41
      %s73 = ssub.s32 %s23, %s37
      %s74 = sor.u32 %s72, %s73
      %p75 = scmp.eq.s32.totalorder %s74, 0
      %s77 = sadd.s32 %s76, 1
      %s78 = scalar_select %p75, %s76, %s77
      %p81 = pneg %p75
      %p82 = scmp.eq.s32.totalorder %s15, 1
      %p83 = por %p81, %p82
      %p84 = scmp.ne.s32.totalorder %s76, %s79
      %p85 = scmp.eq.s32.totalorder %s15, 0
      %p86 = por %p84, %p85
      %p87 = scmp.ne.s32.totalorder %s76, %s79
      %p88 = scmp.eq.s32.totalorder %s20, 1
      %p89 = por %p87, %p88
      %p90 = scmp.ne.s32.totalorder %s79, %s80
      %p91 = scmp.eq.s32.totalorder %s20, 0
      %p92 = por %p90, %p91
      %p93 = scmp.ne.s32.totalorder %s79, %s80
      %p94 = scmp.eq.s32.totalorder %s21, 1
      %p95 = por %p93, %p94
      %p97 = scmp.ne.s32.totalorder %s80, %s96
      %p98 = scmp.eq.s32.totalorder %s21, 0
      %p99 = por %p97, %p98
      %s100 = ssub.s32 %s22, %s41
      %s101 = ssub.s32 %s23, %s37
      %s102 = sor.u32 %s100, %s101
      %p103 = scmp.eq.s32.totalorder %s102, 0
      %s105 = sadd.s32 %s104, 1
      %s106 = scalar_select %p103, %s104, %s105
      %p109 = pneg %p103
      %p110 = scmp.eq.s32.totalorder %s15, 1
      %p111 = por %p109, %p110
      %p112 = scmp.ne.s32.totalorder %s104, %s107
      %p113 = scmp.eq.s32.totalorder %s15, 0
      %p114 = por %p112, %p113
      %p115 = scmp.ne.s32.totalorder %s104, %s107
      %p116 = scmp.eq.s32.totalorder %s20, 1
      %p117 = por %p115, %p116
      %p118 = scmp.ne.s32.totalorder %s107, %s108
      %p119 = scmp.eq.s32.totalorder %s20, 0
      %p120 = por %p118, %p119
      %p121 = scmp.ne.s32.totalorder %s107, %s108
      %p122 = scmp.eq.s32.totalorder %s21, 1
      %p123 = por %p121, %p122
      %p125 = scmp.ne.s32.totalorder %s108, %s124
      %p126 = scmp.eq.s32.totalorder %s21, 0
      %p127 = por %p125, %p126
      %s128 = ssub.s32 %s22, %s41
      %p129 = scmp.eq.s32.totalorder %s128, 0
      %s131 = sadd.s32 %s130, 1
      %s132 = scalar_select %p129, %s130, %s131
      %p135 = pneg %p129
      %p136 = scmp.eq.s32.totalorder %s15, 1
      %p137 = por %p135, %p136
      %p138 = scmp.ne.s32.totalorder %s130, %s133
      %p139 = scmp.eq.s32.totalorder %s15, 0
      %p140 = por %p138, %p139
      %p141 = scmp.ne.s32.totalorder %s130, %s133
      %p142 = scmp.eq.s32.totalorder %s20, 1
      %p143 = por %p141, %p142
      %p144 = scmp.ne.s32.totalorder %s133, %s134
      %p145 = scmp.eq.s32.totalorder %s20, 0
      %p146 = por %p144, %p145
      %p147 = scmp.ne.s32.totalorder %s133, %s134
      %p148 = scmp.eq.s32.totalorder %s21, 1
      %p149 = por %p147, %p148
      %p151 = scmp.ne.s32.totalorder %s134, %s150
      %p152 = scmp.eq.s32.totalorder %s21, 0
      %p153 = por %p151, %p152
      %s154 = ssub.s32 %s22, %s41
      %s155 = ssub.s32 %s23, %s37
      %s156 = sor.u32 %s154, %s155
      %s157 = ssub.s32 %s24, %s33
      %s158 = sor.u32 %s156, %s157
      %p159 = scmp.eq.s32.totalorder %s158, 0
      %s161 = sadd.s32 %s160, 1
      %s162 = scalar_select %p159, %s160, %s161
      %p165 = pneg %p159
      %p166 = scmp.eq.s32.totalorder %s15, 1
      %p167 = por %p165, %p166
      %p168 = scmp.ne.s32.totalorder %s160, %s163
      %p169 = scmp.eq.s32.totalorder %s15, 0
      %p170 = por %p168, %p169
      %p171 = scmp.ne.s32.totalorder %s160, %s163
      %p172 = scmp.eq.s32.totalorder %s20, 1
      %p173 = por %p171, %p172
      %p174 = scmp.ne.s32.totalorder %s163, %s164
      %p175 = scmp.eq.s32.totalorder %s20, 0
      %p176 = por %p174, %p175
      %p177 = scmp.ne.s32.totalorder %s163, %s164
      %p178 = scmp.eq.s32.totalorder %s21, 1
      %p179 = por %p177, %p178
      %p181 = scmp.ne.s32.totalorder %s164, %s180
      %p182 = scmp.eq.s32.totalorder %s21, 0
      %p183 = por %p181, %p182
      %s184 = ssub.s32 %s22, %s41
      %s185 = ssub.s32 %s23, %s37
      %s186 = sor.u32 %s184, %s185
      %s187 = ssub.s32 %s24, %s33
      %s188 = sor.u32 %s186, %s187
      %p189 = scmp.eq.s32.totalorder %s188, 0
      %s191 = sadd.s32 %s190, 1
      %s192 = scalar_select %p189, %s190, %s191
      %p195 = pneg %p189
      %p196 = scmp.eq.s32.totalorder %s15, 1
      %p197 = por %p195, %p196
      %p198 = scmp.ne.s32.totalorder %s190, %s193
      %p199 = scmp.eq.s32.totalorder %s15, 0
      %p200 = por %p198, %p199
      %p201 = scmp.ne.s32.totalorder %s190, %s193
      %p202 = scmp.eq.s32.totalorder %s20, 1
      %p203 = por %p201, %p202
      %p204 = scmp.ne.s32.totalorder %s193, %s194
      %p205 = scmp.eq.s32.totalorder %s20, 0
      %p206 = por %p204, %p205
      %p207 = scmp.ne.s32.totalorder %s193, %s194
      %p208 = scmp.eq.s32.totalorder %s21, 1
      %p209 = por %p207, %p208
      %p211 = scmp.ne.s32.totalorder %s194, %s210
      %p212 = scmp.eq.s32.totalorder %s21, 0
      %p213 = por %p211, %p212
      %p214 = scmp.le.s32.totalorder 1, %s15
      %p215 = scmp.lt.s32.totalorder %s15, 3
      %p216 = pnand %p214, %p215
      %p217 = pneg %p216
      // Predicated region
      $region9: #{tpu_custom_call.1} parent=5 // pred_check
        _
      $region10: #{tpu_custom_call.1} parent=5 // pred_check_branch
        %219 = sbr.rel (%p216) target = $region12
      $region11: #{tpu_custom_call.1} parent=5 // pred_region
        %s220 = ssub.s32 %s15, 1
        // Predicated region
        $region13: #{tpu_custom_call.1} parent=11 // pred_check
          %p221 = pneg %p92
        $region14: #{tpu_custom_call.1} parent=11 // pred_check_branch
          %223 = sbr.rel (%p221) target = $region16
        $region15: #{tpu_custom_call.1} parent=11 // pred_region
          %s224 = smul.u32 2, %s25
          %s225 = smul.u32 2, %s26
          %s226 = smul.addr %s225, 2
          %s227 = smul.addr %s224, 8
          %s228 = sadd.s32 %s226, %s227
          %s229 = smul.addr %s228, 8
          %s230 = scalar_lea.vmem %s1, %s229
          // Predicated region
          $region17: #{tpu_custom_call.1} parent=15 // pred_check
            _
          $region18: #{tpu_custom_call.1} parent=15 // pred_check_branch
            %232 = sbr.rel (0) target = $region20
          $region19: #{tpu_custom_call.1} parent=15 // pred_region
            // Predicated region
            $region21: #{tpu_custom_call.1} parent=19 // pred_check
              _
            $region22: #{tpu_custom_call.1} parent=19 // pred_check_branch
              %234 = sbr.rel (0) target = $region24
            $region23: #{tpu_custom_call.1} parent=19 // pred_region
              // Predicated region
              $region36: #{tpu_custom_call.1} parent=23 // pred_check
                _
              $region37: #{tpu_custom_call.1} parent=23 // pred_check_branch
                %263 = sbr.rel (0) target = $region39
              $region38: #{tpu_custom_call.1} parent=23 // pred_region
                loop: start=0, step=1, limit=1
                $region40: #{tpu_custom_call.1} parent=38 // loop_pre_header
                  _
                $region41: #{tpu_custom_call.1} parent=38 // loop_header
                  %s265 = sphi 0, %s269
                  %p266 = scmp.ge.s32.totalorder %s265, 1
                  %s270 = sphi %s230, %s230
                  %s271 = sphi [#allocation3], [#allocation3]
                $region42: #{tpu_custom_call.1} parent=38 // loop_header_branch
                  %268 = sbr.rel (%p266) target = $region46
                $region43: #{tpu_custom_call.1} parent=38 // loop_body
                  %v272 = vld [vmem:[%s270] sm:$0xff]
                  %273 = vst [vmem:[%s271] sm:$0xff] %v272
                  %v274 = vld [vmem:[%s270 + $0x8] sm:$0xff]
                  %275 = vst [vmem:[%s271 + $0x8] sm:$0xff] %v274
                  %v276 = vld [vmem:[%s270 + $0x10] sm:$0xff]
                  %277 = vst [vmem:[%s271 + $0x10] sm:$0xff] %v276
                  %v278 = vld [vmem:[%s270 + $0x18] sm:$0xff]
                  %279 = vst [vmem:[%s271 + $0x18] sm:$0xff] %v278
                  %v280 = vld [vmem:[%s270 + $0x40] sm:$0xff]
                  %281 = vst [vmem:[%s271 + $0x20] sm:$0xff] %v280
                  %v282 = vld [vmem:[%s270 + $0x48] sm:$0xff]
                  %283 = vst [vmem:[%s271 + $0x28] sm:$0xff] %v282
                  %v284 = vld [vmem:[%s270 + $0x50] sm:$0xff]
                  %285 = vst [vmem:[%s271 + $0x30] sm:$0xff] %v284
                  %v286 = vld [vmem:[%s270 + $0x58] sm:$0xff]
                  %287 = vst [vmem:[%s271 + $0x38] sm:$0xff] %v286
                $region44: #{tpu_custom_call.1} parent=38 // loop_footer
                  %s269 = sadd.s32 1, %s265
                $region45: #{tpu_custom_call.1} parent=38 // loop_footer_branch
                  %264 = sbr.rel target = $region41
                $region46: #{tpu_custom_call.1} parent=38 // loop_exit
                  _
              $region39: #{tpu_custom_call.1} parent=23 // pred_fallthru
                _
              // Predicated region
              $region47: #{tpu_custom_call.1} parent=23 // pred_check
                _
              $region48: #{tpu_custom_call.1} parent=23 // pred_check_branch
                %289 = sbr.rel target = $region50
              $region49: #{tpu_custom_call.1} parent=23 // pred_region
                _
              $region50: #{tpu_custom_call.1} parent=23 // pred_fallthru
                _
            $region24: #{tpu_custom_call.1} parent=19 // pred_fallthru
              _
            // Predicated region
            $region25: #{tpu_custom_call.1} parent=19 // pred_check
              _
            $region26: #{tpu_custom_call.1} parent=19 // pred_check_branch
              %236 = sbr.rel target = $region28
            $region27: #{tpu_custom_call.1} parent=19 // pred_region
              loop: start=0, step=1, limit=1
              $region29: #{tpu_custom_call.1} parent=27 // loop_pre_header
                _
              $region30: #{tpu_custom_call.1} parent=27 // loop_header
                %s239 = sphi 0, %s243
                %p240 = scmp.ge.s32.totalorder %s239, 1
                %s244 = sphi %s230, %s230
                %s245 = sphi [#allocation3], [#allocation3]
              $region31: #{tpu_custom_call.1} parent=27 // loop_header_branch
                %242 = sbr.rel (%p240) target = $region35
              $region32: #{tpu_custom_call.1} parent=27 // loop_body
                %v246 = vld [vmem:[%s244] sm:$0xff]
                %247 = vst [vmem:[%s245] sm:$0xff] %v246
                %v248 = vld [vmem:[%s244 + $0x8] sm:$0xff]
                %249 = vst [vmem:[%s245 + $0x8] sm:$0xff] %v248
                %v250 = vld [vmem:[%s244 + $0x10] sm:$0xff]
                %251 = vst [vmem:[%s245 + $0x10] sm:$0xff] %v250
                %v252 = vld [vmem:[%s244 + $0x18] sm:$0xff]
                %253 = vst [vmem:[%s245 + $0x18] sm:$0xff] %v252
                %v254 = vld [vmem:[%s244 + $0x40] sm:$0xff]
                %255 = vst [vmem:[%s245 + $0x20] sm:$0xff] %v254
                %v256 = vld [vmem:[%s244 + $0x48] sm:$0xff]
                %257 = vst [vmem:[%s245 + $0x28] sm:$0xff] %v256
                %v258 = vld [vmem:[%s244 + $0x50] sm:$0xff]
                %259 = vst [vmem:[%s245 + $0x30] sm:$0xff] %v258
                %v260 = vld [vmem:[%s244 + $0x58] sm:$0xff]
                %261 = vst [vmem:[%s245 + $0x38] sm:$0xff] %v260
              $region33: #{tpu_custom_call.1} parent=27 // loop_footer
                %s243 = sadd.s32 1, %s239
              $region34: #{tpu_custom_call.1} parent=27 // loop_footer_branch
                %238 = sbr.rel target = $region30
              $region35: #{tpu_custom_call.1} parent=27 // loop_exit
                _
            $region28: #{tpu_custom_call.1} parent=19 // pred_fallthru
              _
          $region20: #{tpu_custom_call.1} parent=15 // pred_fallthru
            _
          %290 = vnop
        $region16: #{tpu_custom_call.1} parent=11 // pred_fallthru
          _
        // Predicated region
        $region51: #{tpu_custom_call.1} parent=11 // pred_check
          %p291 = pneg %p120
        $region52: #{tpu_custom_call.1} parent=11 // pred_check_branch
          %293 = sbr.rel (%p291) target = $region54
        $region53: #{tpu_custom_call.1} parent=11 // pred_region
          %s294 = smul.u32 2, %s25
          %s295 = smul.u32 2, %s26
          %s296 = smul.addr %s295, 2
          %s297 = smul.addr %s294, 8
          %s298 = sadd.s32 %s296, %s297
          %s299 = smul.addr %s298, 8
          %s300 = scalar_lea.vmem %s2, %s299
          // Predicated region
          $region55: #{tpu_custom_call.1} parent=53 // pred_check
            _
          $region56: #{tpu_custom_call.1} parent=53 // pred_check_branch
            %302 = sbr.rel (0) target = $region58
          $region57: #{tpu_custom_call.1} parent=53 // pred_region
            // Predicated region
            $region59: #{tpu_custom_call.1} parent=57 // pred_check
              _
            $region60: #{tpu_custom_call.1} parent=57 // pred_check_branch
              %304 = sbr.rel (0) target = $region62
            $region61: #{tpu_custom_call.1} parent=57 // pred_region
              // Predicated region
              $region74: #{tpu_custom_call.1} parent=61 // pred_check
                _
              $region75: #{tpu_custom_call.1} parent=61 // pred_check_branch
                %333 = sbr.rel (0) target = $region77
              $region76: #{tpu_custom_call.1} parent=61 // pred_region
                loop: start=0, step=1, limit=1
                $region78: #{tpu_custom_call.1} parent=76 // loop_pre_header
                  _
                $region79: #{tpu_custom_call.1} parent=76 // loop_header
                  %s335 = sphi 0, %s339
                  %p336 = scmp.ge.s32.totalorder %s335, 1
                  %s340 = sphi %s300, %s300
                  %s341 = sphi [#allocation4], [#allocation4]
                $region80: #{tpu_custom_call.1} parent=76 // loop_header_branch
                  %338 = sbr.rel (%p336) target = $region84
                $region81: #{tpu_custom_call.1} parent=76 // loop_body
                  %v342 = vld [vmem:[%s340] sm:$0xff]
                  %343 = vst [vmem:[%s341] sm:$0xff] %v342
                  %v344 = vld [vmem:[%s340 + $0x8] sm:$0xff]
                  %345 = vst [vmem:[%s341 + $0x8] sm:$0xff] %v344
                  %v346 = vld [vmem:[%s340 + $0x10] sm:$0xff]
                  %347 = vst [vmem:[%s341 + $0x10] sm:$0xff] %v346
                  %v348 = vld [vmem:[%s340 + $0x18] sm:$0xff]
                  %349 = vst [vmem:[%s341 + $0x18] sm:$0xff] %v348
                  %v350 = vld [vmem:[%s340 + $0x40] sm:$0xff]
                  %351 = vst [vmem:[%s341 + $0x20] sm:$0xff] %v350
                  %v352 = vld [vmem:[%s340 + $0x48] sm:$0xff]
                  %353 = vst [vmem:[%s341 + $0x28] sm:$0xff] %v352
                  %v354 = vld [vmem:[%s340 + $0x50] sm:$0xff]
                  %355 = vst [vmem:[%s341 + $0x30] sm:$0xff] %v354
                  %v356 = vld [vmem:[%s340 + $0x58] sm:$0xff]
                  %357 = vst [vmem:[%s341 + $0x38] sm:$0xff] %v356
                $region82: #{tpu_custom_call.1} parent=76 // loop_footer
                  %s339 = sadd.s32 1, %s335
                $region83: #{tpu_custom_call.1} parent=76 // loop_footer_branch
                  %334 = sbr.rel target = $region79
                $region84: #{tpu_custom_call.1} parent=76 // loop_exit
                  _
              $region77: #{tpu_custom_call.1} parent=61 // pred_fallthru
                _
              // Predicated region
              $region85: #{tpu_custom_call.1} parent=61 // pred_check
                _
              $region86: #{tpu_custom_call.1} parent=61 // pred_check_branch
                %359 = sbr.rel target = $region88
              $region87: #{tpu_custom_call.1} parent=61 // pred_region
                _
              $region88: #{tpu_custom_call.1} parent=61 // pred_fallthru
                _
            $region62: #{tpu_custom_call.1} parent=57 // pred_fallthru
              _
            // Predicated region
            $region63: #{tpu_custom_call.1} parent=57 // pred_check
              _
            $region64: #{tpu_custom_call.1} parent=57 // pred_check_branch
              %306 = sbr.rel target = $region66
            $region65: #{tpu_custom_call.1} parent=57 // pred_region
              loop: start=0, step=1, limit=1
              $region67: #{tpu_custom_call.1} parent=65 // loop_pre_header
                _
              $region68: #{tpu_custom_call.1} parent=65 // loop_header
                %s309 = sphi 0, %s313
                %p310 = scmp.ge.s32.totalorder %s309, 1
                %s314 = sphi %s300, %s300
                %s315 = sphi [#allocation4], [#allocation4]
              $region69: #{tpu_custom_call.1} parent=65 // loop_header_branch
                %312 = sbr.rel (%p310) target = $region73
              $region70: #{tpu_custom_call.1} parent=65 // loop_body
                %v316 = vld [vmem:[%s314] sm:$0xff]
                %317 = vst [vmem:[%s315] sm:$0xff] %v316
                %v318 = vld [vmem:[%s314 + $0x8] sm:$0xff]
                %319 = vst [vmem:[%s315 + $0x8] sm:$0xff] %v318
                %v320 = vld [vmem:[%s314 + $0x10] sm:$0xff]
                %321 = vst [vmem:[%s315 + $0x10] sm:$0xff] %v320
                %v322 = vld [vmem:[%s314 + $0x18] sm:$0xff]
                %323 = vst [vmem:[%s315 + $0x18] sm:$0xff] %v322
                %v324 = vld [vmem:[%s314 + $0x40] sm:$0xff]
                %325 = vst [vmem:[%s315 + $0x20] sm:$0xff] %v324
                %v326 = vld [vmem:[%s314 + $0x48] sm:$0xff]
                %327 = vst [vmem:[%s315 + $0x28] sm:$0xff] %v326
                %v328 = vld [vmem:[%s314 + $0x50] sm:$0xff]
                %329 = vst [vmem:[%s315 + $0x30] sm:$0xff] %v328
                %v330 = vld [vmem:[%s314 + $0x58] sm:$0xff]
                %331 = vst [vmem:[%s315 + $0x38] sm:$0xff] %v330
              $region71: #{tpu_custom_call.1} parent=65 // loop_footer
                %s313 = sadd.s32 1, %s309
              $region72: #{tpu_custom_call.1} parent=65 // loop_footer_branch
                %308 = sbr.rel target = $region68
              $region73: #{tpu_custom_call.1} parent=65 // loop_exit
                _
            $region66: #{tpu_custom_call.1} parent=57 // pred_fallthru
              _
          $region58: #{tpu_custom_call.1} parent=53 // pred_fallthru
            _
          %360 = vnop
        $region54: #{tpu_custom_call.1} parent=11 // pred_fallthru
          _
        // Predicated region
        $region89: #{tpu_custom_call.1} parent=11 // pred_check
          %p361 = pneg %p146
        $region90: #{tpu_custom_call.1} parent=11 // pred_check_branch
          %363 = sbr.rel (%p361) target = $region92
        $region91: #{tpu_custom_call.1} parent=11 // pred_region
          %s364 = smul.u32 2, %s25
          %p365 = scmp.lt.s32.totalorder %s364, 1
          %s366 = scalar_select %p365, %s364, 1
          %s367 = scalar_lea.vmem %s3, %s366
          %s368 = smul.u32 2, %s25
        $region92: #{tpu_custom_call.1} parent=11 // pred_fallthru
          _
      $region12: #{tpu_custom_call.1} parent=5 // pred_fallthru
        _
      %p369 = scmp.lt.s32.totalorder %s15, 2
      // Predicated region
      $region93: #{tpu_custom_call.1} parent=5 // pred_check
        %p370 = pneg %p369
      $region94: #{tpu_custom_call.1} parent=5 // pred_check_branch
        %372 = sbr.rel (%p370) target = $region96
      $region95: #{tpu_custom_call.1} parent=5 // pred_region
        // Predicated region
        $region97: #{tpu_custom_call.1} parent=95 // pred_check
          %p373 = pneg %p58
        $region98: #{tpu_custom_call.1} parent=95 // pred_check_branch
          %375 = sbr.rel (%p373) target = $region100
        $region99: #{tpu_custom_call.1} parent=95 // pred_region
          %s376 = sand.u32 %s48, 1
          %s377 = sand.u32 %s48, 1
          %s378 = smul.addr %s377, 64
          %s379 = scalar_lea.vmem [#allocation2], %s378
          %s380 = smul.u32 2, %s22
          %s381 = smul.u32 2, %s23
          %s382 = smul.u32 2, %s24
          %s383 = smul.addr %s381, 2
          %s384 = sadd.s32 %s382, %s383
          %s385 = smul.addr %s380, 8
          %s386 = sadd.s32 %s384, %s385
          %s387 = smul.addr %s386, 8
          %s388 = scalar_lea.vmem %s0, %s387
          // Predicated region
          $region101: #{tpu_custom_call.1} parent=99 // pred_check
            _
          $region102: #{tpu_custom_call.1} parent=99 // pred_check_branch
            %390 = sbr.rel (0) target = $region104
          $region103: #{tpu_custom_call.1} parent=99 // pred_region
            // Predicated region
            $region105: #{tpu_custom_call.1} parent=103 // pred_check
              _
            $region106: #{tpu_custom_call.1} parent=103 // pred_check_branch
              %392 = sbr.rel (0) target = $region108
            $region107: #{tpu_custom_call.1} parent=103 // pred_region
              // Predicated region
              $region120: #{tpu_custom_call.1} parent=107 // pred_check
                _
              $region121: #{tpu_custom_call.1} parent=107 // pred_check_branch
                %421 = sbr.rel (0) target = $region123
              $region122: #{tpu_custom_call.1} parent=107 // pred_region
                loop: start=0, step=1, limit=1
                $region124: #{tpu_custom_call.1} parent=122 // loop_pre_header
                  _
                $region125: #{tpu_custom_call.1} parent=122 // loop_header
                  %s423 = sphi 0, %s427
                  %p424 = scmp.ge.s32.totalorder %s423, 1
                  %s428 = sphi %s388, %s388
                  %s429 = sphi %s379, %s379
                $region126: #{tpu_custom_call.1} parent=122 // loop_header_branch
                  %426 = sbr.rel (%p424) target = $region130
                $region127: #{tpu_custom_call.1} parent=122 // loop_body
                  %v430 = vld [vmem:[%s428] sm:$0xff]
                  %431 = vst [vmem:[%s429] sm:$0xff] %v430
                  %v432 = vld [vmem:[%s428 + $0x8] sm:$0xff]
                  %433 = vst [vmem:[%s429 + $0x8] sm:$0xff] %v432
                  %v434 = vld [vmem:[%s428 + $0x10] sm:$0xff]
                  %435 = vst [vmem:[%s429 + $0x10] sm:$0xff] %v434
                  %v436 = vld [vmem:[%s428 + $0x18] sm:$0xff]
                  %437 = vst [vmem:[%s429 + $0x18] sm:$0xff] %v436
                  %v438 = vld [vmem:[%s428 + $0x40] sm:$0xff]
                  %439 = vst [vmem:[%s429 + $0x20] sm:$0xff] %v438
                  %v440 = vld [vmem:[%s428 + $0x48] sm:$0xff]
                  %441 = vst [vmem:[%s429 + $0x28] sm:$0xff] %v440
                  %v442 = vld [vmem:[%s428 + $0x50] sm:$0xff]
                  %443 = vst [vmem:[%s429 + $0x30] sm:$0xff] %v442
                  %v444 = vld [vmem:[%s428 + $0x58] sm:$0xff]
                  %445 = vst [vmem:[%s429 + $0x38] sm:$0xff] %v444
                $region128: #{tpu_custom_call.1} parent=122 // loop_footer
                  %s427 = sadd.s32 1, %s423
                $region129: #{tpu_custom_call.1} parent=122 // loop_footer_branch
                  %422 = sbr.rel target = $region125
                $region130: #{tpu_custom_call.1} parent=122 // loop_exit
                  _
              $region123: #{tpu_custom_call.1} parent=107 // pred_fallthru
                _
              // Predicated region
              $region131: #{tpu_custom_call.1} parent=107 // pred_check
                _
              $region132: #{tpu_custom_call.1} parent=107 // pred_check_branch
                %447 = sbr.rel target = $region134
              $region133: #{tpu_custom_call.1} parent=107 // pred_region
                _
              $region134: #{tpu_custom_call.1} parent=107 // pred_fallthru
                _
            $region108: #{tpu_custom_call.1} parent=103 // pred_fallthru
              _
            // Predicated region
            $region109: #{tpu_custom_call.1} parent=103 // pred_check
              _
            $region110: #{tpu_custom_call.1} parent=103 // pred_check_branch
              %394 = sbr.rel target = $region112
            $region111: #{tpu_custom_call.1} parent=103 // pred_region
              loop: start=0, step=1, limit=1
              $region113: #{tpu_custom_call.1} parent=111 // loop_pre_header
                _
              $region114: #{tpu_custom_call.1} parent=111 // loop_header
                %s397 = sphi 0, %s401
                %p398 = scmp.ge.s32.totalorder %s397, 1
                %s402 = sphi %s388, %s388
                %s403 = sphi %s379, %s379
              $region115: #{tpu_custom_call.1} parent=111 // loop_header_branch
                %400 = sbr.rel (%p398) target = $region119
              $region116: #{tpu_custom_call.1} parent=111 // loop_body
                %v404 = vld [vmem:[%s402] sm:$0xff]
                %405 = vst [vmem:[%s403] sm:$0xff] %v404
                %v406 = vld [vmem:[%s402 + $0x8] sm:$0xff]
                %407 = vst [vmem:[%s403 + $0x8] sm:$0xff] %v406
                %v408 = vld [vmem:[%s402 + $0x10] sm:$0xff]
                %409 = vst [vmem:[%s403 + $0x10] sm:$0xff] %v408
                %v410 = vld [vmem:[%s402 + $0x18] sm:$0xff]
                %411 = vst [vmem:[%s403 + $0x18] sm:$0xff] %v410
                %v412 = vld [vmem:[%s402 + $0x40] sm:$0xff]
                %413 = vst [vmem:[%s403 + $0x20] sm:$0xff] %v412
                %v414 = vld [vmem:[%s402 + $0x48] sm:$0xff]
                %415 = vst [vmem:[%s403 + $0x28] sm:$0xff] %v414
                %v416 = vld [vmem:[%s402 + $0x50] sm:$0xff]
                %417 = vst [vmem:[%s403 + $0x30] sm:$0xff] %v416
                %v418 = vld [vmem:[%s402 + $0x58] sm:$0xff]
                %419 = vst [vmem:[%s403 + $0x38] sm:$0xff] %v418
              $region117: #{tpu_custom_call.1} parent=111 // loop_footer
                %s401 = sadd.s32 1, %s397
              $region118: #{tpu_custom_call.1} parent=111 // loop_footer_branch
                %396 = sbr.rel target = $region114
              $region119: #{tpu_custom_call.1} parent=111 // loop_exit
                _
            $region112: #{tpu_custom_call.1} parent=103 // pred_fallthru
              _
          $region104: #{tpu_custom_call.1} parent=99 // pred_fallthru
            _
          %448 = vnop
        $region100: #{tpu_custom_call.1} parent=95 // pred_fallthru
          _
      $region96: #{tpu_custom_call.1} parent=5 // pred_fallthru
        _
      %p449 = scmp.le.s32.totalorder 1, %s15
      %p450 = scmp.lt.s32.totalorder %s15, 3
      %p451 = pnand %p449, %p450
      %p452 = pneg %p451
      // Predicated region
      $region135: #{tpu_custom_call.1} parent=5 // pred_check
        _
      $region136: #{tpu_custom_call.1} parent=5 // pred_check_branch
        %454 = sbr.rel (%p451) target = $region138
      $region137: #{tpu_custom_call.1} parent=5 // pred_region
        %s455 = ssub.s32 %s15, 1
        %s456 = sand.u32 %s51, 1
        %s457 = sand.u32 %s51, 1
        %s458 = smul.addr %s457, 64
        %s459 = scalar_lea.vmem [#allocation2], %s458
        // Predicated region
        $region139: #{tpu_custom_call.1} parent=137 // pred_check
          %p460 = pneg %p64
        $region140: #{tpu_custom_call.1} parent=137 // pred_check_branch
          %462 = sbr.rel (%p460) target = $region142
        $region141: #{tpu_custom_call.1} parent=137 // pred_region
          _
        $region142: #{tpu_custom_call.1} parent=137 // pred_fallthru
          _
        // Predicated region
        $region143: #{tpu_custom_call.1} parent=137 // pred_check
          %p463 = pneg %p92
        $region144: #{tpu_custom_call.1} parent=137 // pred_check_branch
          %465 = sbr.rel (%p463) target = $region146
        $region145: #{tpu_custom_call.1} parent=137 // pred_region
          _
        $region146: #{tpu_custom_call.1} parent=137 // pred_fallthru
          _
        // Predicated region
        $region147: #{tpu_custom_call.1} parent=137 // pred_check
          %p466 = pneg %p120
        $region148: #{tpu_custom_call.1} parent=137 // pred_check_branch
          %468 = sbr.rel (%p466) target = $region150
        $region149: #{tpu_custom_call.1} parent=137 // pred_region
          _
        $region150: #{tpu_custom_call.1} parent=137 // pred_fallthru
          _
        %s469 = sand.u32 %s51, 1
        %s470 = sand.u32 %s51, 1
        %s471 = smul.addr %s470, 64
        %s472 = scalar_lea.vmem [#allocation2], %s471
        %p473 = pneg %p64
        %p474 = pneg %p61
        %p475 = pneg %p92
        %p476 = pneg %p89
        %p477 = pneg %p120
        %p478 = pneg %p117
        %s479 = smul.u32 2, %s25
        %p480 = scmp.lt.s32.totalorder %s479, 1
        %s481 = scalar_select %p480, %s479, 1
        %s482 = scalar_lea.vmem %s3, %s481
        %p483 = pneg %p146
        %p484 = pneg %p143
        %p485 = pneg %p176
        %p486 = pneg %p173
        %s487 = sand.u32 %s163, 1
        %s488 = sand.u32 %s163, 1
        %s489 = smul.addr %s488, 64
        %s490 = scalar_lea.vmem [#allocation5], %s489
        %p491 = pneg %p206
        %p492 = pneg %p203
        %s493 = sand.u32 %s193, 1
        %s494 = scalar_lea.sflag [#allocation7], %s493
        %s495 = sand.u32 %s193, 1
        %s496 = smul.addr %s495, 64
        %s497 = scalar_lea.vmem [#allocation6], %s496
        %s498 = smul.u32 2, %s25
        %s499 = smul.u32 2, %s26
        %s500 = smul.u32 2, %s27
        %s501 = smul.u32 2, %s25
        %s502 = smul.u32 2, %s26
        %s503 = smul.u32 2, %s25
        %s504 = smul.u32 2, %s26
        %s505 = smul.u32 2, %s25
        %p506 = scmp.lt.s32.totalorder %s505, 1
        %s507 = scalar_select %p506, %s505, 1
        %s508 = scalar_lea.vmem %s3, %s507
        %s509 = smul.u32 2, %s25
        %s510 = smul.u32 2, %s25
        %s511 = smul.u32 2, %s26
        %s512 = smul.u32 2, %s27
        %s513 = smul.u32 2, %s25
        %s514 = smul.u32 2, %s26
        %s515 = smul.u32 2, %s27
        %v517 = vld [vmem:[%s459] sm:$0xff]
        %v518 = vld [vmem:[%s459 + $0x8] sm:$0xff]
        %v519 = vld [vmem:[%s459 + $0x10] sm:$0xff]
        %v520 = vld [vmem:[%s459 + $0x18] sm:$0xff]
        %v521 = vld [vmem:[%s459 + $0x20] sm:$0xff]
        %v522 = vld [vmem:[%s459 + $0x28] sm:$0xff]
        %v523 = vld [vmem:[%s459 + $0x30] sm:$0xff]
        %v524 = vld [vmem:[%s459 + $0x38] sm:$0xff]
        %v525 = vmul.f32 %v517, 0.35355338
        %v526 = vmul.f32 %v518, 0.35355338
        %v527 = vmul.f32 %v519, 0.35355338
        %v528 = vmul.f32 %v520, 0.35355338
        %v529 = vmul.f32 %v521, 0.35355338
        %v530 = vmul.f32 %v522, 0.35355338
        %v531 = vmul.f32 %v523, 0.35355338
        %v532 = vmul.f32 %v524, 0.35355338
        %v533 = vpack.c.bf16 %v526, %v525
        %v534 = vpack.c.bf16 %v528, %v527
        %v535 = vpack.c.bf16 %v530, %v529
        %v536 = vpack.c.bf16 %v532, %v531
        %v537 = vld [vmem:[#allocation3] sm:$0xff]
        %v538 = vld [vmem:[#allocation3 + $0x8] sm:$0xff]
        %v539 = vld [vmem:[#allocation3 + $0x10] sm:$0xff]
        %v540 = vld [vmem:[#allocation3 + $0x18] sm:$0xff]
        %v541 = vld [vmem:[#allocation3 + $0x20] sm:$0xff]
        %v542 = vld [vmem:[#allocation3 + $0x28] sm:$0xff]
        %v543 = vld [vmem:[#allocation3 + $0x30] sm:$0xff]
        %v544 = vld [vmem:[#allocation3 + $0x38] sm:$0xff]
        %v545 = vpack.c.bf16 %v538, %v537
        %v546 = vpack.c.bf16 %v540, %v539
        %v547 = vpack.c.bf16 %v542, %v541
        %v548 = vpack.c.bf16 %v544, %v543
        %vm549 = vcmask 64512
        %v551 = vsel %vm549, %v533, 0
        %v554 = vsel %vm549, %v545, 0
        %556 = vmatprep.subr.bf16.mxu0 0
        %557 = vmatpush1.bf16.xpose.msra.mxu0 %v554
        %558 = vmatprep.subr.bf16.mxu0 0
        %559 = vmatpush1.bf16.xpose.msra.mxu0 0
        %560 = vmatprep.subr.bf16.mxu0 0
        %561 = vmatpush1.bf16.xpose.msra.mxu0 0
        %562 = vmatprep.subr.bf16.mxu0 0
        %563 = vmatpush1.bf16.xpose.msra.mxu0 0
        %564 = vmatprep.subr.bf16.mxu0 0
        %565 = vmatpush1.bf16.xpose.msra.mxu0 0
        %566 = vmatprep.subr.bf16.mxu0 0
        %567 = vmatpush1.bf16.xpose.msra.mxu0 0
        %568 = vmatprep.subr.bf16.mxu0 0
        %569 = vmatpush1.bf16.xpose.msra.mxu0 0
        %570 = vmatprep.subr.bf16.mxu0 0
        %571 = vmatpush1.bf16.xpose.msra.mxu0 0
        %572 = vmatprep.subr.bf16.mxu0 0
        %573 = vmatpush1.bf16.xpose.msra.mxu0 0
        %574 = vmatprep.subr.bf16.mxu0 0
        %575 = vmatpush1.bf16.xpose.msra.mxu0 0
        %576 = vmatprep.subr.bf16.mxu0 0
        %577 = vmatpush1.bf16.xpose.msra.mxu0 0
        %578 = vmatprep.subr.bf16.mxu0 0
        %579 = vmatpush1.bf16.xpose.msra.mxu0 0
        %580 = vmatprep.subr.bf16.mxu0 0
        %581 = vmatpush1.bf16.xpose.msra.mxu0 0
        %582 = vmatprep.subr.bf16.mxu0 0
        %583 = vmatpush1.bf16.xpose.msra.mxu0 0
        %584 = vmatprep.subr.bf16.mxu0 0
        %585 = vmatpush1.bf16.xpose.msra.mxu0 0
        %586 = vmatprep.subr.bf16.mxu0 0
        %587 = vmatpush1.bf16.xpose.msra.mxu0 0
        %588 = vmatprep.mubr.bf16.mxu0 0
        %589 = vmatmul.mubr.bf16.gmra.mrb[0].mxu0 %v551
        %v590 = vpop.f32.mrb[0].mxu0
        %v591 = vadd.f32 0.0, %v590
        %v592 = vpop.f32.mrb[0].mxu0
        %v593 = vpop.f32.mrb[0].mxu0
        %v594 = vadd.f32 0.0, %v593
        %v595 = vpop.f32.mrb[0].mxu0
        %596 = vdwg.mxu0
        %v598 = vsel %vm549, %v534, 0
        %v601 = vsel %vm549, %v546, 0
        %603 = vmatprep.subr.bf16.mxu0 0
        %604 = vmatpush1.bf16.xpose.msra.mxu0 %v601
        %605 = vmatprep.subr.bf16.mxu0 0
        %606 = vmatpush1.bf16.xpose.msra.mxu0 0
        %607 = vmatprep.subr.bf16.mxu0 0
        %608 = vmatpush1.bf16.xpose.msra.mxu0 0
        %609 = vmatprep.subr.bf16.mxu0 0
        %610 = vmatpush1.bf16.xpose.msra.mxu0 0
        %611 = vmatprep.subr.bf16.mxu0 0
        %612 = vmatpush1.bf16.xpose.msra.mxu0 0
        %613 = vmatprep.subr.bf16.mxu0 0
        %614 = vmatpush1.bf16.xpose.msra.mxu0 0
        %615 = vmatprep.subr.bf16.mxu0 0
        %616 = vmatpush1.bf16.xpose.msra.mxu0 0
        %617 = vmatprep.subr.bf16.mxu0 0
        %618 = vmatpush1.bf16.xpose.msra.mxu0 0
        %619 = vmatprep.subr.bf16.mxu0 0
        %620 = vmatpush1.bf16.xpose.msra.mxu0 0
        %621 = vmatprep.subr.bf16.mxu0 0
        %622 = vmatpush1.bf16.xpose.msra.mxu0 0
        %623 = vmatprep.subr.bf16.mxu0 0
        %624 = vmatpush1.bf16.xpose.msra.mxu0 0
        %625 = vmatprep.subr.bf16.mxu0 0
        %626 = vmatpush1.bf16.xpose.msra.mxu0 0
        %627 = vmatprep.subr.bf16.mxu0 0
        %628 = vmatpush1.bf16.xpose.msra.mxu0 0
        %629 = vmatprep.subr.bf16.mxu0 0
        %630 = vmatpush1.bf16.xpose.msra.mxu0 0
        %631 = vmatprep.subr.bf16.mxu0 0
        %632 = vmatpush1.bf16.xpose.msra.mxu0 0
        %633 = vmatprep.subr.bf16.mxu0 0
        %634 = vmatpush1.bf16.xpose.msra.mxu0 0
        %635 = vmatprep.mubr.bf16.mxu0 0
        %636 = vmatmul.mubr.bf16.gmra.mrb[0].mxu0 %v598
        %v637 = vpop.f32.mrb[0].mxu0
        %v638 = vadd.f32 0.0, %v637
        %v639 = vpop.f32.mrb[0].mxu0
        %v640 = vpop.f32.mrb[0].mxu0
        %v641 = vadd.f32 0.0, %v640
        %v642 = vpop.f32.mrb[0].mxu0
        %643 = vdwg.mxu0
        %v645 = vsel %vm549, %v535, 0
        %v648 = vsel %vm549, %v547, 0
        %650 = vmatprep.subr.bf16.mxu0 0
        %651 = vmatpush1.bf16.xpose.msra.mxu0 %v648
        %652 = vmatprep.subr.bf16.mxu0 0
        %653 = vmatpush1.bf16.xpose.msra.mxu0 0
        %654 = vmatprep.subr.bf16.mxu0 0
        %655 = vmatpush1.bf16.xpose.msra.mxu0 0
        %656 = vmatprep.subr.bf16.mxu0 0
        %657 = vmatpush1.bf16.xpose.msra.mxu0 0
        %658 = vmatprep.subr.bf16.mxu0 0
        %659 = vmatpush1.bf16.xpose.msra.mxu0 0
        %660 = vmatprep.subr.bf16.mxu0 0
        %661 = vmatpush1.bf16.xpose.msra.mxu0 0
        %662 = vmatprep.subr.bf16.mxu0 0
        %663 = vmatpush1.bf16.xpose.msra.mxu0 0
        %664 = vmatprep.subr.bf16.mxu0 0
        %665 = vmatpush1.bf16.xpose.msra.mxu0 0
        %666 = vmatprep.subr.bf16.mxu0 0
        %667 = vmatpush1.bf16.xpose.msra.mxu0 0
        %668 = vmatprep.subr.bf16.mxu0 0
        %669 = vmatpush1.bf16.xpose.msra.mxu0 0
        %670 = vmatprep.subr.bf16.mxu0 0
        %671 = vmatpush1.bf16.xpose.msra.mxu0 0
        %672 = vmatprep.subr.bf16.mxu0 0
        %673 = vmatpush1.bf16.xpose.msra.mxu0 0
        %674 = vmatprep.subr.bf16.mxu0 0
        %675 = vmatpush1.bf16.xpose.msra.mxu0 0
        %676 = vmatprep.subr.bf16.mxu0 0
        %677 = vmatpush1.bf16.xpose.msra.mxu0 0
        %678 = vmatprep.subr.bf16.mxu0 0
        %679 = vmatpush1.bf16.xpose.msra.mxu0 0
        %680 = vmatprep.subr.bf16.mxu0 0
        %681 = vmatpush1.bf16.xpose.msra.mxu0 0
        %682 = vmatprep.mubr.bf16.mxu0 0
        %683 = vmatmul.mubr.bf16.gmra.mrb[0].mxu0 %v645
        %v684 = vpop.f32.mrb[0].mxu0
        %v685 = vadd.f32 0.0, %v684
        %v686 = vpop.f32.mrb[0].mxu0
        %v687 = vpop.f32.mrb[0].mxu0
        %v688 = vadd.f32 0.0, %v687
        %v689 = vpop.f32.mrb[0].mxu0
        %690 = vdwg.mxu0
        %v692 = vsel %vm549, %v536, 0
        %v695 = vsel %vm549, %v548, 0
        %697 = vmatprep.subr.bf16.mxu0 0
        %698 = vmatpush1.bf16.xpose.msra.mxu0 %v695
        %699 = vmatprep.subr.bf16.mxu0 0
        %700 = vmatpush1.bf16.xpose.msra.mxu0 0
        %701 = vmatprep.subr.bf16.mxu0 0
        %702 = vmatpush1.bf16.xpose.msra.mxu0 0
        %703 = vmatprep.subr.bf16.mxu0 0
        %704 = vmatpush1.bf16.xpose.msra.mxu0 0
        %705 = vmatprep.subr.bf16.mxu0 0
        %706 = vmatpush1.bf16.xpose.msra.mxu0 0
        %707 = vmatprep.subr.bf16.mxu0 0
        %708 = vmatpush1.bf16.xpose.msra.mxu0 0
        %709 = vmatprep.subr.bf16.mxu0 0
        %710 = vmatpush1.bf16.xpose.msra.mxu0 0
        %711 = vmatprep.subr.bf16.mxu0 0
        %712 = vmatpush1.bf16.xpose.msra.mxu0 0
        %713 = vmatprep.subr.bf16.mxu0 0
        %714 = vmatpush1.bf16.xpose.msra.mxu0 0
        %715 = vmatprep.subr.bf16.mxu0 0
        %716 = vmatpush1.bf16.xpose.msra.mxu0 0
        %717 = vmatprep.subr.bf16.mxu0 0
        %718 = vmatpush1.bf16.xpose.msra.mxu0 0
        %719 = vmatprep.subr.bf16.mxu0 0
        %720 = vmatpush1.bf16.xpose.msra.mxu0 0
        %721 = vmatprep.subr.bf16.mxu0 0
        %722 = vmatpush1.bf16.xpose.msra.mxu0 0
        %723 = vmatprep.subr.bf16.mxu0 0
        %724 = vmatpush1.bf16.xpose.msra.mxu0 0
        %725 = vmatprep.subr.bf16.mxu0 0
        %726 = vmatpush1.bf16.xpose.msra.mxu0 0
        %727 = vmatprep.subr.bf16.mxu0 0
        %728 = vmatpush1.bf16.xpose.msra.mxu0 0
        %729 = vmatprep.mubr.bf16.mxu0 0
        %730 = vmatmul.mubr.bf16.gmra.mrb[0].mxu0 %v692
        %v731 = vpop.f32.mrb[0].mxu0
        %v732 = vadd.f32 0.0, %v731
        %v733 = vpop.f32.mrb[0].mxu0
        %v734 = vpop.f32.mrb[0].mxu0
        %v735 = vadd.f32 0.0, %v734
        %v736 = vpop.f32.mrb[0].mxu0
        %737 = vdwg.mxu0
        %v738 = vld [vmem:[%s508] sm:$0x1]
        %v739 = vld [vmem:[%s508 + $0x1] sm:$0x1]
        %v740 = vsub.f32 %v738, 1.0
        %v741 = vsub.f32 %v739, 1.0
        %v742 = vmul.f32 %v740, 1e+09
        %v743 = vmul.f32 %v741, 1e+09
        %v746 = vlaneseq
        %v747 = vshrl.u32 %v746, 7
        %v748 = vsub.s32 0, %v747
        %v749 = vrot.slane %v742, %v748
        %v750 = vlaneseq
        %v751 = vshrl.u32 %v750, 7
        %v752 = vsub.s32 0, %v751
        %v753 = vrot.slane %v743, %v752
        %v756 = vadd.f32 %v591, %v749
        %v757 = vadd.f32 %v594, %v749
        %v758 = vadd.f32 %v638, %v749
        %v759 = vadd.f32 %v641, %v749
        %v760 = vadd.f32 %v685, %v753
        %v761 = vadd.f32 %v688, %v753
        %v762 = vadd.f32 %v732, %v753
        %v763 = vadd.f32 %v735, %v753
        %vm764 = vcmask 130048
        %v765 = vsel %vm764, %v756, -inf
        %766 = vmax.xlane.f32.xlu0 %v765
        %v767 = vpop.xlane.xlu0 %766
        %v768 = vsel %vm764, %v757, -inf
        %769 = vmax.xlane.f32.xlu0 %v768
        %v770 = vpop.xlane.xlu0 %769
        %v771 = vsel %vm764, %v758, -inf
        %772 = vmax.xlane.f32.xlu0 %v771
        %v773 = vpop.xlane.xlu0 %772
        %v774 = vsel %vm764, %v759, -inf
        %775 = vmax.xlane.f32.xlu0 %v774
        %v776 = vpop.xlane.xlu0 %775
        %v777 = vsel %vm764, %v760, -inf
        %778 = vmax.xlane.f32.xlu0 %v777
        %v779 = vpop.xlane.xlu0 %778
        %v780 = vsel %vm764, %v761, -inf
        %781 = vmax.xlane.f32.xlu0 %v780
        %v782 = vpop.xlane.xlu0 %781
        %v783 = vsel %vm764, %v762, -inf
        %784 = vmax.xlane.f32.xlu0 %v783
        %v785 = vpop.xlane.xlu0 %784
        %v786 = vsel %vm764, %v763, -inf
        %787 = vmax.xlane.f32.xlu0 %v786
        %v788 = vpop.xlane.xlu0 %787
        %v789 = vsub.f32 %v756, %v767
        %v790 = vsub.f32 %v757, %v770
        %v791 = vsub.f32 %v758, %v773
        %v792 = vsub.f32 %v759, %v776
        %v793 = vsub.f32 %v760, %v779
        %v794 = vsub.f32 %v761, %v782
        %v795 = vsub.f32 %v762, %v785
        %v796 = vsub.f32 %v763, %v788
        %v797 = vmul.f32 %v789, 1.442695
        %v798 = vpow.pop %v797
        %v799 = vmul.f32 %v790, 1.442695
        %v800 = vpow.pop %v799
        %v801 = vmul.f32 %v791, 1.442695
        %v802 = vpow.pop %v801
        %v803 = vmul.f32 %v792, 1.442695
        %v804 = vpow.pop %v803
        %v805 = vmul.f32 %v793, 1.442695
        %v806 = vpow.pop %v805
        %v807 = vmul.f32 %v794, 1.442695
        %v808 = vpow.pop %v807
        %v809 = vmul.f32 %v795, 1.442695
        %v810 = vpow.pop %v809
        %v811 = vmul.f32 %v796, 1.442695
        %v812 = vpow.pop %v811
        %v813 = vsel %vm764, %v798, 0.0
        %814 = vadd.xlane.f32.xlu0 %v813
        %v815 = vpop.xlane.xlu0 %814
        %v816 = vsel %vm764, %v800, 0.0
        %817 = vadd.xlane.f32.xlu0 %v816
        %v818 = vpop.xlane.xlu0 %817
        %v819 = vsel %vm764, %v802, 0.0
        %820 = vadd.xlane.f32.xlu0 %v819
        %v821 = vpop.xlane.xlu0 %820
        %v822 = vsel %vm764, %v804, 0.0
        %823 = vadd.xlane.f32.xlu0 %v822
        %v824 = vpop.xlane.xlu0 %823
        %v825 = vsel %vm764, %v806, 0.0
        %826 = vadd.xlane.f32.xlu0 %v825
        %v827 = vpop.xlane.xlu0 %826
        %v828 = vsel %vm764, %v808, 0.0
        %829 = vadd.xlane.f32.xlu0 %v828
        %v830 = vpop.xlane.xlu0 %829
        %v831 = vsel %vm764, %v810, 0.0
        %832 = vadd.xlane.f32.xlu0 %v831
        %v833 = vpop.xlane.xlu0 %832
        %v834 = vsel %vm764, %v812, 0.0
        %835 = vadd.xlane.f32.xlu0 %v834
        %v836 = vpop.xlane.xlu0 %835
        %v837 = vrcp.pop %v815
        %v838 = vrcp.pop %v818
        %v839 = vrcp.pop %v821
        %v840 = vrcp.pop %v824
        %v841 = vrcp.pop %v827
        %v842 = vrcp.pop %v830
        %v843 = vrcp.pop %v833
        %v844 = vrcp.pop %v836
        %v845 = vmul.f32 %v798, %v837
        %v846 = vmul.f32 %v800, %v838
        %v847 = vmul.f32 %v802, %v839
        %v848 = vmul.f32 %v804, %v840
        %v849 = vmul.f32 %v806, %v841
        %v850 = vmul.f32 %v808, %v842
        %v851 = vmul.f32 %v810, %v843
        %v852 = vmul.f32 %v812, %v844
        %v853 = vpack.c.bf16 %v846, %v845
        %v854 = vpack.c.bf16 %v848, %v847
        %v855 = vpack.c.bf16 %v850, %v849
        %v856 = vpack.c.bf16 %v852, %v851
        %v857 = vld [vmem:[#allocation4] sm:$0xff]
        %v858 = vld [vmem:[#allocation4 + $0x8] sm:$0xff]
        %v859 = vld [vmem:[#allocation4 + $0x10] sm:$0xff]
        %v860 = vld [vmem:[#allocation4 + $0x18] sm:$0xff]
        %v861 = vld [vmem:[#allocation4 + $0x20] sm:$0xff]
        %v862 = vld [vmem:[#allocation4 + $0x28] sm:$0xff]
        %v863 = vld [vmem:[#allocation4 + $0x30] sm:$0xff]
        %v864 = vld [vmem:[#allocation4 + $0x38] sm:$0xff]
        %v865 = vpack.c.bf16 %v858, %v857
        %v866 = vpack.c.bf16 %v860, %v859
        %v867 = vpack.c.bf16 %v862, %v861
        %v868 = vpack.c.bf16 %v864, %v863
        %v870 = vsel %vm764, %v853, 0
        %872 = vmatprep.subr.bf16.mxu0 0
        %873 = vmatpush1.bf16.msra.mxu0 %v865
        %874 = vmatprep.subr.bf16.mxu0 0
        %875 = vmatpush1.bf16.msra.mxu0 0
        %876 = vmatprep.subr.bf16.mxu0 0
        %877 = vmatpush1.bf16.msra.mxu0 0
        %878 = vmatprep.subr.bf16.mxu0 0
        %879 = vmatpush1.bf16.msra.mxu0 0
        %880 = vmatprep.subr.bf16.mxu0 0
        %881 = vmatpush1.bf16.msra.mxu0 0
        %882 = vmatprep.subr.bf16.mxu0 0
        %883 = vmatpush1.bf16.msra.mxu0 0
        %884 = vmatprep.subr.bf16.mxu0 0
        %885 = vmatpush1.bf16.msra.mxu0 0
        %886 = vmatprep.subr.bf16.mxu0 0
        %887 = vmatpush1.bf16.msra.mxu0 0
        %888 = vmatprep.subr.bf16.mxu0 0
        %889 = vmatpush1.bf16.msra.mxu0 0
        %890 = vmatprep.subr.bf16.mxu0 0
        %891 = vmatpush1.bf16.msra.mxu0 0
        %892 = vmatprep.subr.bf16.mxu0 0
        %893 = vmatpush1.bf16.msra.mxu0 0
        %894 = vmatprep.subr.bf16.mxu0 0
        %895 = vmatpush1.bf16.msra.mxu0 0
        %896 = vmatprep.subr.bf16.mxu0 0
        %897 = vmatpush1.bf16.msra.mxu0 0
        %898 = vmatprep.subr.bf16.mxu0 0
        %899 = vmatpush1.bf16.msra.mxu0 0
        %900 = vmatprep.subr.bf16.mxu0 0
        %901 = vmatpush1.bf16.msra.mxu0 0
        %902 = vmatprep.subr.bf16.mxu0 0
        %903 = vmatpush1.bf16.msra.mxu0 0
        %904 = vmatprep.mubr.bf16.mxu0 0
        %905 = vmatmul.mubr.bf16.gmra.mrb[0].mxu0 %v870
        %v906 = vpop.f32.mrb[0].mxu0
        %v907 = vadd.f32 0.0, %v906
        %v908 = vpop.f32.mrb[0].mxu0
        %v909 = vpop.f32.mrb[0].mxu0
        %v910 = vadd.f32 0.0, %v909
        %v911 = vpop.f32.mrb[0].mxu0
        %912 = vdwg.mxu0
        %v914 = vsel %vm764, %v854, 0
        %916 = vmatprep.subr.bf16.mxu0 0
        %917 = vmatpush1.bf16.msra.mxu0 %v866
        %918 = vmatprep.subr.bf16.mxu0 0
        %919 = vmatpush1.bf16.msra.mxu0 0
        %920 = vmatprep.subr.bf16.mxu0 0
        %921 = vmatpush1.bf16.msra.mxu0 0
        %922 = vmatprep.subr.bf16.mxu0 0
        %923 = vmatpush1.bf16.msra.mxu0 0
        %924 = vmatprep.subr.bf16.mxu0 0
        %925 = vmatpush1.bf16.msra.mxu0 0
        %926 = vmatprep.subr.bf16.mxu0 0
        %927 = vmatpush1.bf16.msra.mxu0 0
        %928 = vmatprep.subr.bf16.mxu0 0
        %929 = vmatpush1.bf16.msra.mxu0 0
        %930 = vmatprep.subr.bf16.mxu0 0
        %931 = vmatpush1.bf16.msra.mxu0 0
        %932 = vmatprep.subr.bf16.mxu0 0
        %933 = vmatpush1.bf16.msra.mxu0 0
        %934 = vmatprep.subr.bf16.mxu0 0
        %935 = vmatpush1.bf16.msra.mxu0 0
        %936 = vmatprep.subr.bf16.mxu0 0
        %937 = vmatpush1.bf16.msra.mxu0 0
        %938 = vmatprep.subr.bf16.mxu0 0
        %939 = vmatpush1.bf16.msra.mxu0 0
        %940 = vmatprep.subr.bf16.mxu0 0
        %941 = vmatpush1.bf16.msra.mxu0 0
        %942 = vmatprep.subr.bf16.mxu0 0
        %943 = vmatpush1.bf16.msra.mxu0 0
        %944 = vmatprep.subr.bf16.mxu0 0
        %945 = vmatpush1.bf16.msra.mxu0 0
        %946 = vmatprep.subr.bf16.mxu0 0
        %947 = vmatpush1.bf16.msra.mxu0 0
        %948 = vmatprep.mubr.bf16.mxu0 0
        %949 = vmatmul.mubr.bf16.gmra.mrb[0].mxu0 %v914
        %v950 = vpop.f32.mrb[0].mxu0
        %v951 = vadd.f32 0.0, %v950
        %v952 = vpop.f32.mrb[0].mxu0
        %v953 = vpop.f32.mrb[0].mxu0
        %v954 = vadd.f32 0.0, %v953
        %v955 = vpop.f32.mrb[0].mxu0
        %956 = vdwg.mxu0
        %v958 = vsel %vm764, %v855, 0
        %960 = vmatprep.subr.bf16.mxu0 0
        %961 = vmatpush1.bf16.msra.mxu0 %v867
        %962 = vmatprep.subr.bf16.mxu0 0
        %963 = vmatpush1.bf16.msra.mxu0 0
        %964 = vmatprep.subr.bf16.mxu0 0
        %965 = vmatpush1.bf16.msra.mxu0 0
        %966 = vmatprep.subr.bf16.mxu0 0
        %967 = vmatpush1.bf16.msra.mxu0 0
        %968 = vmatprep.subr.bf16.mxu0 0
        %969 = vmatpush1.bf16.msra.mxu0 0
        %970 = vmatprep.subr.bf16.mxu0 0
        %971 = vmatpush1.bf16.msra.mxu0 0
        %972 = vmatprep.subr.bf16.mxu0 0
        %973 = vmatpush1.bf16.msra.mxu0 0
        %974 = vmatprep.subr.bf16.mxu0 0
        %975 = vmatpush1.bf16.msra.mxu0 0
        %976 = vmatprep.subr.bf16.mxu0 0
        %977 = vmatpush1.bf16.msra.mxu0 0
        %978 = vmatprep.subr.bf16.mxu0 0
        %979 = vmatpush1.bf16.msra.mxu0 0
        %980 = vmatprep.subr.bf16.mxu0 0
        %981 = vmatpush1.bf16.msra.mxu0 0
        %982 = vmatprep.subr.bf16.mxu0 0
        %983 = vmatpush1.bf16.msra.mxu0 0
        %984 = vmatprep.subr.bf16.mxu0 0
        %985 = vmatpush1.bf16.msra.mxu0 0
        %986 = vmatprep.subr.bf16.mxu0 0
        %987 = vmatpush1.bf16.msra.mxu0 0
        %988 = vmatprep.subr.bf16.mxu0 0
        %989 = vmatpush1.bf16.msra.mxu0 0
        %990 = vmatprep.subr.bf16.mxu0 0
        %991 = vmatpush1.bf16.msra.mxu0 0
        %992 = vmatprep.mubr.bf16.mxu0 0
        %993 = vmatmul.mubr.bf16.gmra.mrb[0].mxu0 %v958
        %v994 = vpop.f32.mrb[0].mxu0
        %v995 = vadd.f32 0.0, %v994
        %v996 = vpop.f32.mrb[0].mxu0
        %v997 = vpop.f32.mrb[0].mxu0
        %v998 = vadd.f32 0.0, %v997
        %v999 = vpop.f32.mrb[0].mxu0
        %1000 = vdwg.mxu0
        %v1002 = vsel %vm764, %v856, 0
        %1004 = vmatprep.subr.bf16.mxu0 0
        %1005 = vmatpush1.bf16.msra.mxu0 %v868
        %1006 = vmatprep.subr.bf16.mxu0 0
        %1007 = vmatpush1.bf16.msra.mxu0 0
        %1008 = vmatprep.subr.bf16.mxu0 0
        %1009 = vmatpush1.bf16.msra.mxu0 0
        %1010 = vmatprep.subr.bf16.mxu0 0
        %1011 = vmatpush1.bf16.msra.mxu0 0
        %1012 = vmatprep.subr.bf16.mxu0 0
        %1013 = vmatpush1.bf16.msra.mxu0 0
        %1014 = vmatprep.subr.bf16.mxu0 0
        %1015 = vmatpush1.bf16.msra.mxu0 0
        %1016 = vmatprep.subr.bf16.mxu0 0
        %1017 = vmatpush1.bf16.msra.mxu0 0
        %1018 = vmatprep.subr.bf16.mxu0 0
        %1019 = vmatpush1.bf16.msra.mxu0 0
        %1020 = vmatprep.subr.bf16.mxu0 0
        %1021 = vmatpush1.bf16.msra.mxu0 0
        %1022 = vmatprep.subr.bf16.mxu0 0
        %1023 = vmatpush1.bf16.msra.mxu0 0
        %1024 = vmatprep.subr.bf16.mxu0 0
        %1025 = vmatpush1.bf16.msra.mxu0 0
        %1026 = vmatprep.subr.bf16.mxu0 0
        %1027 = vmatpush1.bf16.msra.mxu0 0
        %1028 = vmatprep.subr.bf16.mxu0 0
        %1029 = vmatpush1.bf16.msra.mxu0 0
        %1030 = vmatprep.subr.bf16.mxu0 0
        %1031 = vmatpush1.bf16.msra.mxu0 0
        %1032 = vmatprep.subr.bf16.mxu0 0
        %1033 = vmatpush1.bf16.msra.mxu0 0
        %1034 = vmatprep.subr.bf16.mxu0 0
        %1035 = vmatpush1.bf16.msra.mxu0 0
        %1036 = vmatprep.mubr.bf16.mxu0 0
        %1037 = vmatmul.mubr.bf16.gmra.mrb[0].mxu0 %v1002
        %v1038 = vpop.f32.mrb[0].mxu0
        %v1039 = vadd.f32 0.0, %v1038
        %v1040 = vpop.f32.mrb[0].mxu0
        %v1041 = vpop.f32.mrb[0].mxu0
        %v1042 = vadd.f32 0.0, %v1041
        %v1043 = vpop.f32.mrb[0].mxu0
        %1044 = vdwg.mxu0
        %1045 = vst.msk [vmem:[%s490] sm:$0xff] %vm549, %v907
        %1046 = vst.msk [vmem:[%s490 + $0x8] sm:$0xff] %vm549, %v910
        %1047 = vst.msk [vmem:[%s490 + $0x10] sm:$0xff] %vm549, %v951
        %1048 = vst.msk [vmem:[%s490 + $0x18] sm:$0xff] %vm549, %v954
        %1049 = vst.msk [vmem:[%s490 + $0x20] sm:$0xff] %vm549, %v995
        %1050 = vst.msk [vmem:[%s490 + $0x28] sm:$0xff] %vm549, %v998
        %1051 = vst.msk [vmem:[%s490 + $0x30] sm:$0xff] %vm549, %v1039
        %1052 = vst.msk [vmem:[%s490 + $0x38] sm:$0xff] %vm549, %v1042
        %1053 = vst.msk [vmem:[%s497] sm:$0xff] %vm764, %v845
        %1054 = vst.msk [vmem:[%s497 + $0x8] sm:$0xff] %vm764, %v846
        %1055 = vst.msk [vmem:[%s497 + $0x10] sm:$0xff] %vm764, %v847
        %1056 = vst.msk [vmem:[%s497 + $0x18] sm:$0xff] %vm764, %v848
        %1057 = vst.msk [vmem:[%s497 + $0x20] sm:$0xff] %vm764, %v849
        %1058 = vst.msk [vmem:[%s497 + $0x28] sm:$0xff] %vm764, %v850
        %1059 = vst.msk [vmem:[%s497 + $0x30] sm:$0xff] %vm764, %v851
        %1060 = vst.msk [vmem:[%s497 + $0x38] sm:$0xff] %vm764, %v852
        %s1061 = sand.u32 %s163, 1
        %s1062 = sand.u32 %s163, 1
        %s1063 = smul.addr %s1062, 64
        %s1064 = scalar_lea.vmem [#allocation5], %s1063
        %s1065 = sand.u32 %s193, 1
        %s1066 = scalar_lea.sflag [#allocation7], %s1065
        %s1067 = sand.u32 %s193, 1
        %s1068 = smul.addr %s1067, 64
        %s1069 = scalar_lea.vmem [#allocation6], %s1068
        // Predicated region
        $region151: #{tpu_custom_call.1} parent=137 // pred_check
          %p1070 = pneg %p173
        $region152: #{tpu_custom_call.1} parent=137 // pred_check_branch
          %1072 = sbr.rel (%p1070) target = $region154
        $region153: #{tpu_custom_call.1} parent=137 // pred_region
          %s1073 = smul.u32 2, %s25
          %s1074 = smul.u32 2, %s26
          %s1075 = smul.u32 2, %s27
          %s1076 = smul.addr %s1074, 2
          %s1077 = sadd.s32 %s1075, %s1076
          %s1078 = smul.addr %s1073, 8
          %s1079 = sadd.s32 %s1077, %s1078
          %s1080 = smul.addr %s1079, 8
          %s1081 = scalar_lea.vmem %s4, %s1080
          // Predicated region
          $region155: #{tpu_custom_call.1} parent=153 // pred_check
            _
          $region156: #{tpu_custom_call.1} parent=153 // pred_check_branch
            %1083 = sbr.rel (0) target = $region158
          $region157: #{tpu_custom_call.1} parent=153 // pred_region
            // Predicated region
            $region159: #{tpu_custom_call.1} parent=157 // pred_check
              _
            $region160: #{tpu_custom_call.1} parent=157 // pred_check_branch
              %1085 = sbr.rel (0) target = $region162
            $region161: #{tpu_custom_call.1} parent=157 // pred_region
              // Predicated region
              $region174: #{tpu_custom_call.1} parent=161 // pred_check
                _
              $region175: #{tpu_custom_call.1} parent=161 // pred_check_branch
                %1114 = sbr.rel (0) target = $region177
              $region176: #{tpu_custom_call.1} parent=161 // pred_region
                loop: start=0, step=1, limit=1
                $region178: #{tpu_custom_call.1} parent=176 // loop_pre_header
                  _
                $region179: #{tpu_custom_call.1} parent=176 // loop_header
                  %s1116 = sphi 0, %s1120
                  %p1117 = scmp.ge.s32.totalorder %s1116, 1
                  %s1121 = sphi %s1064, %s1064
                  %s1122 = sphi %s1081, %s1081
                $region180: #{tpu_custom_call.1} parent=176 // loop_header_branch
                  %1119 = sbr.rel (%p1117) target = $region184
                $region181: #{tpu_custom_call.1} parent=176 // loop_body
                  %v1123 = vld [vmem:[%s1121] sm:$0xff]
                  %1124 = vst [vmem:[%s1122] sm:$0xff] %v1123
                  %v1125 = vld [vmem:[%s1121 + $0x8] sm:$0xff]
                  %1126 = vst [vmem:[%s1122 + $0x8] sm:$0xff] %v1125
                  %v1127 = vld [vmem:[%s1121 + $0x10] sm:$0xff]
                  %1128 = vst [vmem:[%s1122 + $0x10] sm:$0xff] %v1127
                  %v1129 = vld [vmem:[%s1121 + $0x18] sm:$0xff]
                  %1130 = vst [vmem:[%s1122 + $0x18] sm:$0xff] %v1129
                  %v1131 = vld [vmem:[%s1121 + $0x20] sm:$0xff]
                  %1132 = vst [vmem:[%s1122 + $0x40] sm:$0xff] %v1131
                  %v1133 = vld [vmem:[%s1121 + $0x28] sm:$0xff]
                  %1134 = vst [vmem:[%s1122 + $0x48] sm:$0xff] %v1133
                  %v1135 = vld [vmem:[%s1121 + $0x30] sm:$0xff]
                  %1136 = vst [vmem:[%s1122 + $0x50] sm:$0xff] %v1135
                  %v1137 = vld [vmem:[%s1121 + $0x38] sm:$0xff]
                  %1138 = vst [vmem:[%s1122 + $0x58] sm:$0xff] %v1137
                $region182: #{tpu_custom_call.1} parent=176 // loop_footer
                  %s1120 = sadd.s32 1, %s1116
                $region183: #{tpu_custom_call.1} parent=176 // loop_footer_branch
                  %1115 = sbr.rel target = $region179
                $region184: #{tpu_custom_call.1} parent=176 // loop_exit
                  _
              $region177: #{tpu_custom_call.1} parent=161 // pred_fallthru
                _
              // Predicated region
              $region185: #{tpu_custom_call.1} parent=161 // pred_check
                _
              $region186: #{tpu_custom_call.1} parent=161 // pred_check_branch
                %1140 = sbr.rel target = $region188
              $region187: #{tpu_custom_call.1} parent=161 // pred_region
                _
              $region188: #{tpu_custom_call.1} parent=161 // pred_fallthru
                _
            $region162: #{tpu_custom_call.1} parent=157 // pred_fallthru
              _
            // Predicated region
            $region163: #{tpu_custom_call.1} parent=157 // pred_check
              _
            $region164: #{tpu_custom_call.1} parent=157 // pred_check_branch
              %1087 = sbr.rel target = $region166
            $region165: #{tpu_custom_call.1} parent=157 // pred_region
              loop: start=0, step=1, limit=1
              $region167: #{tpu_custom_call.1} parent=165 // loop_pre_header
                _
              $region168: #{tpu_custom_call.1} parent=165 // loop_header
                %s1090 = sphi 0, %s1094
                %p1091 = scmp.ge.s32.totalorder %s1090, 1
                %s1095 = sphi %s1064, %s1064
                %s1096 = sphi %s1081, %s1081
              $region169: #{tpu_custom_call.1} parent=165 // loop_header_branch
                %1093 = sbr.rel (%p1091) target = $region173
              $region170: #{tpu_custom_call.1} parent=165 // loop_body
                %v1097 = vld [vmem:[%s1095] sm:$0xff]
                %1098 = vst [vmem:[%s1096] sm:$0xff] %v1097
                %v1099 = vld [vmem:[%s1095 + $0x8] sm:$0xff]
                %1100 = vst [vmem:[%s1096 + $0x8] sm:$0xff] %v1099
                %v1101 = vld [vmem:[%s1095 + $0x10] sm:$0xff]
                %1102 = vst [vmem:[%s1096 + $0x10] sm:$0xff] %v1101
                %v1103 = vld [vmem:[%s1095 + $0x18] sm:$0xff]
                %1104 = vst [vmem:[%s1096 + $0x18] sm:$0xff] %v1103
                %v1105 = vld [vmem:[%s1095 + $0x20] sm:$0xff]
                %1106 = vst [vmem:[%s1096 + $0x40] sm:$0xff] %v1105
                %v1107 = vld [vmem:[%s1095 + $0x28] sm:$0xff]
                %1108 = vst [vmem:[%s1096 + $0x48] sm:$0xff] %v1107
                %v1109 = vld [vmem:[%s1095 + $0x30] sm:$0xff]
                %1110 = vst [vmem:[%s1096 + $0x50] sm:$0xff] %v1109
                %v1111 = vld [vmem:[%s1095 + $0x38] sm:$0xff]
                %1112 = vst [vmem:[%s1096 + $0x58] sm:$0xff] %v1111
              $region171: #{tpu_custom_call.1} parent=165 // loop_footer
                %s1094 = sadd.s32 1, %s1090
              $region172: #{tpu_custom_call.1} parent=165 // loop_footer_branch
                %1089 = sbr.rel target = $region168
              $region173: #{tpu_custom_call.1} parent=165 // loop_exit
                _
            $region166: #{tpu_custom_call.1} parent=157 // pred_fallthru
              _
          $region158: #{tpu_custom_call.1} parent=153 // pred_fallthru
            _
          %1141 = vnop
        $region154: #{tpu_custom_call.1} parent=137 // pred_fallthru
          _
        // Predicated region
        $region189: #{tpu_custom_call.1} parent=137 // pred_check
          %p1142 = pneg %p203
        $region190: #{tpu_custom_call.1} parent=137 // pred_check_branch
          %1144 = sbr.rel (%p1142) target = $region192
        $region191: #{tpu_custom_call.1} parent=137 // pred_region
          #allocation9 [shape = 'u32[6]{0}', space=smem, size = 0x18, scoped, tag = 'DMA stride descriptor']
          %s1145 = smul.u32 2, %s25
          %s1146 = smul.u32 2, %s26
          %s1147 = smul.u32 2, %s27
          %s1149 = ssub.s32 1024, 1024
          %1150 = vsyncadd %s1066, %s1149
          %s1151 = smul.addr %s1146, 2
          %s1152 = sadd.s32 %s1147, %s1151
          %s1153 = smul.addr %s1145, 8
          %s1154 = sadd.s32 %s1152, %s1153
          %s1155 = smul.addr %s1154, 128
          %s1156 = scalar_lea.hbm %s5, %s1155
          %s1158 = sshll.u32 1, 14
          %s1159 = sxor.u32 4294967295, %s1158
          %s1162 = sshll.u32 7, 18
          %s1163 = sxor.u32 4294967295, %s1162
          %s1164 = sand.u32 0, %s1163
          %s1166 = sor.u32 %s1164, 0
          %s1168 = sshll.u32 3, 24
          %s1169 = sxor.u32 4294967295, %s1168
          %s1170 = sand.u32 %s1166, %s1169
          %s1172 = sor.u32 %s1170, 0
          %s1173 = sshll.u32 %s1069, 4
          %s1174 = int_to_ptr.vmem [resolvable:$true] %s1173
          %1180 = sst [smem:[#allocation9]] 512
          %s1181 = scalar_lea.smem [#allocation9], 1
          %1182 = sst [smem:[%s1181]] 1024
          %s1183 = scalar_lea.smem [#allocation9], 2
          %1184 = sst [smem:[%s1183]] 4
          %s1185 = scalar_lea.smem [#allocation9], 3
          %1186 = sst [smem:[%s1185]] 128
          %s1187 = scalar_lea.smem [#allocation9], 4
          %1188 = sst [smem:[%s1187]] 128
          %s1189 = scalar_lea.smem [#allocation9], 5
          %1190 = sst [smem:[%s1189]] 8
          %1192 = dma.general %s1174, 1024, %s1156, %s1066, [#allocation8], [#allocation9], %s1172, 0
        $region192: #{tpu_custom_call.1} parent=137 // pred_fallthru
          _
      $region138: #{tpu_custom_call.1} parent=5 // pred_fallthru
        _
      %p1193 = scmp.le.s32.totalorder 2, %s15
      // Predicated region
      $region193: #{tpu_custom_call.1} parent=5 // pred_check
        %p1194 = pneg %p1193
      $region194: #{tpu_custom_call.1} parent=5 // pred_check_branch
        %1196 = sbr.rel (%p1194) target = $region196
      $region195: #{tpu_custom_call.1} parent=5 // pred_region
        %s1197 = ssub.s32 %s15, 2
        // Predicated region
        $region197: #{tpu_custom_call.1} parent=195 // pred_check
          %p1198 = pneg %p179
        $region198: #{tpu_custom_call.1} parent=195 // pred_check_branch
          %1200 = sbr.rel (%p1198) target = $region200
        $region199: #{tpu_custom_call.1} parent=195 // pred_region
          %s1201 = sand.u32 %s164, 1
          %s1202 = sand.u32 %s164, 1
          %s1203 = smul.addr %s1202, 64
          %s1204 = scalar_lea.vmem [#allocation5], %s1203
        $region200: #{tpu_custom_call.1} parent=195 // pred_fallthru
          _
        // Predicated region
        $region201: #{tpu_custom_call.1} parent=195 // pred_check
          %p1205 = pneg %p209
        $region202: #{tpu_custom_call.1} parent=195 // pred_check_branch
          %1207 = sbr.rel (%p1205) target = $region204
        $region203: #{tpu_custom_call.1} parent=195 // pred_region
          %s1208 = sand.u32 %s194, 1
          %s1209 = scalar_lea.sflag [#allocation7], %s1208
          %s1210 = sand.u32 %s194, 1
          %s1211 = smul.addr %s1210, 64
          %s1212 = scalar_lea.vmem [#allocation6], %s1211
          %1213 = dma.done %s1209, 1024
        $region204: #{tpu_custom_call.1} parent=195 // pred_fallthru
          _
      $region196: #{tpu_custom_call.1} parent=5 // pred_fallthru
        _
    $region6: #{tpu_custom_call.1} parent=1 // loop_footer
      %s19 = sadd.s32 1, %s15
    $region7: #{tpu_custom_call.1} parent=1 // loop_footer_branch
      %14 = sbr.rel target = $region3
    $region8: #{tpu_custom_call.1} parent=1 // loop_exit
      _
    %1214 = vsyncpa [#allocation7], 1
    %s1215 = scalar_lea.sflag [#allocation7], 1
    %1216 = vsyncpa %s1215, 1

</llo_original>
